<compile_context>
chip_gen: v7x
topology: tpu7x:2x2x1
jax: 0.10.0
libtpu: 0.0.40
codegen_flags: <defaults>
</compile_context>

<pallas_src>
import functools

import jax
import jax.numpy as jnp
from jax.experimental import pallas as pl
from jax.experimental.pallas import tpu as pltpu

IN_DIM = 2
HIDDEN_DIM = 256
OUT_DIM = 1


def mlp_kernel(x_ref,
               w1_ref, b1_ref,
               w2_ref, b2_ref,
               w3_ref, b3_ref,
               w4_ref, b4_ref,
               w5_ref, b5_ref,
               o_ref):
    tile_b = x_ref.shape[0]

    # ---- layer 1: contraction dim is only IN_DIM=2 -> skip the MXU, use VPU
    #      broadcast multiply-adds (x[:, k:k+1] * w1[k, :]) in f32. -----------
    x = x_ref[...].astype(jnp.float32)            # (tile_b, IN_DIM)
    w1 = w1_ref[...].astype(jnp.float32)          # (IN_DIM, HIDDEN)
    h = x[:, 0:1] * w1[0:1, :]
    for k in range(1, IN_DIM):                    # static unroll (IN_DIM small)
        h = h + x[:, k:k + 1] * w1[k:k + 1, :]
    h = jnp.maximum(h + b1_ref[...].astype(jnp.float32), 0.0)

    # ---- layers 2-4: 256x256 matmuls on the MXU, f32 accumulation.
    #      Epilogue (bias + ReLU) runs in the bias dtype: bf16 on v6e/v7x
    #      (pre-cast in the wrapper), f32 on v5e. -----------------------------
    for w_ref, b_ref in ((w2_ref, b2_ref), (w3_ref, b3_ref), (w4_ref, b4_ref)):
        acc = jnp.dot(h.astype(w_ref.dtype), w_ref[...],
                      preferred_element_type=jnp.float32)
        h = jnp.maximum(acc.astype(b_ref.dtype) + b_ref[...], 0.0)

    # ---- layer 5: N=1 -> VPU multiply (weight dtype) + f32 cross-lane
    #      reduction (XLU); store lane-dense as a (1, tile_b) row. b5 is an
    #      SMEM scalar. -------------------------------------------------------
    w5 = w5_ref[...]                                        # (1, HIDDEN)
    prod = h.astype(w5.dtype) * w5                          # (tile_b, HIDDEN)
    y = jnp.sum(prod.astype(jnp.float32), axis=-1)          # (tile_b,)
    o_ref[...] = (y.reshape(1, tile_b) + b5_ref[0, 0]).astype(o_ref.dtype)


def _round_up(n, m):
    return ((n + m - 1) // m) * m


@functools.partial(
    jax.jit,
    static_argnames=("tile_b", "max_tile_b", "mxu_dtype", "epilogue_dtype"))
def mlp_forward(x, params, *, tile_b=None, max_tile_b=1024,
                mxu_dtype=jnp.bfloat16, epilogue_dtype=None):
    """Forward pass of the MLP.

    tile_b: batch rows per grid step (multiple of 128). None -> auto:
            min(max_tile_b, round_up(cdiv(B, 2), 128)) so big batches use
            512-1024-row tiles and the grid still has >=2 steps for v7x's
            two TensorCores.
    mxu_dtype: storage/compute dtype of the three 256x256 hidden weights
            (bf16 default: MXU fast path on v5e/v6e/v7x; accumulation is f32).
    epilogue_dtype: dtype of the bias-add + ReLU between matmuls. Defaults to
            mxu_dtype (bf16 epilogue on v6e/v7x); pass jnp.float32 on v5e.
    """
    B, in_dim = x.shape
    assert in_dim == IN_DIM
    if epilogue_dtype is None:
        epilogue_dtype = mxu_dtype
    (w1, b1), (w2, b2), (w3, b3), (w4, b4), (w5, b5) = params

    if tile_b is None:
        tile_b = max(128, min(max_tile_b, _round_up(pl.cdiv(B, 2), 128)))
    assert tile_b % 128 == 0, "tile_b must be a multiple of 128 (MXU/lane alignment)"

    num_tiles = pl.cdiv(B, tile_b)
    b_pad = num_tiles * tile_b
    if b_pad != B:                       # pad the batch instead of asserting divisibility
        x = jnp.pad(x, ((0, b_pad - B), (0, 0)))

    # Hidden-layer weights in bf16 (default): halves weight DMA/VMEM and cuts
    # MXU passes ~2-3x on every TPU generation. Accumulation stays f32.
    w2c, w3c, w4c = (w.astype(mxu_dtype) for w in (w2, w3, w4))
    # Biases for layers 2-4 pre-cast to the epilogue dtype (bf16 on v6e/v7x).
    b2c, b3c, b4c = (b.astype(epilogue_dtype) for b in (b2, b3, b4))
    # Last layer weight as a lane-dense (1, HIDDEN) row (== PyTorch's [out, in]).
    w5_row = w5.T.astype(mxu_dtype)

    rep = lambda i: (0, 0)               # weights/biases: same full block every step
    wspec = lambda shape: pl.BlockSpec(shape, rep)

    out = pl.pallas_call(
        mlp_kernel,
        # Lane-dense output slab: (1, B_pad), batch on the lane axis.
        out_shape=jax.ShapeDtypeStruct((1, b_pad), x.dtype),
        grid_spec=pltpu.PrefetchScalarGridSpec(
            num_scalar_prefetch=0,
            grid=(num_tiles,),
            in_specs=[
                pl.BlockSpec((tile_b, IN_DIM), lambda i: (i, 0)),
                wspec((IN_DIM, HIDDEN_DIM)), wspec((1, HIDDEN_DIM)),
                wspec((HIDDEN_DIM, HIDDEN_DIM)), wspec((1, HIDDEN_DIM)),
                wspec((HIDDEN_DIM, HIDDEN_DIM)), wspec((1, HIDDEN_DIM)),
                wspec((HIDDEN_DIM, HIDDEN_DIM)), wspec((1, HIDDEN_DIM)),
                wspec((1, HIDDEN_DIM)),
                # b5: single f32 scalar -> SMEM, read as b5_ref[0, 0].
                pl.BlockSpec(memory_space=pltpu.MemorySpace.SMEM),
            ],
            out_specs=pl.BlockSpec((1, tile_b), lambda i: (0, i)),
        ),
        compiler_params=pltpu.CompilerParams(
            dimension_semantics=("parallel",)),
    )(x, w1, b1, w2c, b2c, w3c, b3c, w4c, b4c, w5_row, b5)

    return out[0, :B].reshape(B, OUT_DIM)


def init_params(key, dtype=jnp.float32):
    """Deterministic PyTorch-style (uniform +/- 1/sqrt(fan_in)) init."""
    dims = [(IN_DIM, HIDDEN_DIM), (HIDDEN_DIM, HIDDEN_DIM),
            (HIDDEN_DIM, HIDDEN_DIM), (HIDDEN_DIM, HIDDEN_DIM),
            (HIDDEN_DIM, OUT_DIM)]
    params = []
    for (fan_in, fan_out) in dims:
        key, kw, kb = jax.random.split(key, 3)
        bound = 1.0 / (fan_in ** 0.5)
        w = jax.random.uniform(kw, (fan_in, fan_out), dtype, -bound, bound)
        b = jax.random.uniform(kb, (1, fan_out), dtype, -bound, bound)
        params.append((w, b))
    return params


def mlp_reference(x, params):
    """Pure-JAX f32 reference, mathematically identical to the PyTorch module's
    forward (Linear+ReLU x4, Linear)."""
    (w1, b1), (w2, b2), (w3, b3), (w4, b4), (w5, b5) = params
    h = x[:, 0:1] * w1[0:1, :]
    for k in range(1, IN_DIM):
        h = h + x[:, k:k + 1] * w1[k:k + 1, :]
    h = jnp.maximum(h + b1, 0.0)
    for w, b in ((w2, b2), (w3, b3), (w4, b4)):
        h = jnp.maximum(jnp.dot(h, w) + b, 0.0)
    return jnp.sum(h * w5.T, axis=-1, keepdims=True) + b5


if __name__ == "__main__":
    key = jax.random.PRNGKey(0)
    key, kx = jax.random.split(key)

    # Deliberately not a multiple of 128 to exercise the cdiv+pad path; the
    # auto tile picker gives tile_b=128, num_tiles=2 (batch splits across
    # v7x's two TensorCores).
    B = 200
    x = jax.random.normal(kx, (B, IN_DIM), jnp.float32)
    params = init_params(jax.random.PRNGKey(0))

    y_ref = mlp_reference(x, params)

    # f32 path (exact semantics of the PyTorch module).
    y_f32 = jax.block_until_ready(
        mlp_forward(x, params, mxu_dtype=jnp.float32))
    assert y_f32.shape == (B, OUT_DIM)
    assert jnp.allclose(y_f32, y_ref, atol=2e-4, rtol=2e-4), "f32 mismatch vs reference"

    # Default path: bf16 matmuls + bf16 epilogue (v6e/v7x).
    y_bf16 = jax.block_until_ready(mlp_forward(x, params))
    assert y_bf16.shape == (B, OUT_DIM)
    assert jnp.allclose(y_bf16, y_ref, atol=2.5e-1, rtol=2.5e-1), "bf16 mismatch vs reference"

    # v5e-style path: bf16 matmuls, f32 elementwise epilogue (no bf16 VPU there).
    y_v5e = jax.block_until_ready(
        mlp_forward(x, params, epilogue_dtype=jnp.float32))
    assert jnp.allclose(y_v5e, y_ref, atol=2.5e-1, rtol=2.5e-1), "bf16/f32-epilogue mismatch"

    print("KERNEL_OK")
</pallas_src>

<mosaic_0001>
module attributes {stable_mosaic.version = 11 : i64} {
  func.func @mlp_kernel(%arg0: i32, %arg1: memref<128x2xf32, #tpu.memory_space<vmem>>, %arg2: memref<2x256xf32, #tpu.memory_space<vmem>>, %arg3: memref<1x256xf32, #tpu.memory_space<vmem>>, %arg4: memref<256x256xf32, #tpu.memory_space<vmem>>, %arg5: memref<1x256xf32, #tpu.memory_space<vmem>>, %arg6: memref<256x256xf32, #tpu.memory_space<vmem>>, %arg7: memref<1x256xf32, #tpu.memory_space<vmem>>, %arg8: memref<256x256xf32, #tpu.memory_space<vmem>>, %arg9: memref<1x256xf32, #tpu.memory_space<vmem>>, %arg10: memref<1x256xf32, #tpu.memory_space<vmem>>, %arg11: memref<1x1xf32, #tpu.memory_space<smem>>, %arg12: memref<1x128xf32, #tpu.memory_space<vmem>>) attributes {dimension_semantics = [#tpu.dimension_semantics<parallel>], iteration_bounds = array<i64: 2>, scalar_prefetch = 0 : i64, scratch_operands = 0 : i64, tpu.core_type = #tpu.core_type<tc>, window_params = [{transform_indices = @transform_0, window_bounds = array<i64: 128, 2>}, {pipeline_mode = #tpu.pipeline_mode<synchronous>, transform_indices = @transform_1, window_bounds = array<i64: 2, 256>}, {pipeline_mode = #tpu.pipeline_mode<synchronous>, transform_indices = @transform_2, window_bounds = array<i64: 1, 256>}, {pipeline_mode = #tpu.pipeline_mode<synchronous>, transform_indices = @transform_3, window_bounds = array<i64: 256, 256>}, {pipeline_mode = #tpu.pipeline_mode<synchronous>, transform_indices = @transform_4, window_bounds = array<i64: 1, 256>}, {pipeline_mode = #tpu.pipeline_mode<synchronous>, transform_indices = @transform_5, window_bounds = array<i64: 256, 256>}, {pipeline_mode = #tpu.pipeline_mode<synchronous>, transform_indices = @transform_6, window_bounds = array<i64: 1, 256>}, {pipeline_mode = #tpu.pipeline_mode<synchronous>, transform_indices = @transform_7, window_bounds = array<i64: 256, 256>}, {pipeline_mode = #tpu.pipeline_mode<synchronous>, transform_indices = @transform_8, window_bounds = array<i64: 1, 256>}, {pipeline_mode = #tpu.pipeline_mode<synchronous>, transform_indices = @transform_9, window_bounds = array<i64: 1, 256>}, {transform_indices = @transform_10, window_bounds = array<i64: 1, 1>}, {transform_indices = @transform_11, window_bounds = array<i64: 1, 128>}]} {
    %c0 = arith.constant 0 : index
    %c0_0 = arith.constant 0 : index
    %0 = vector.load %arg1[%c0, %c0_0] : memref<128x2xf32, #tpu.memory_space<vmem>>, vector<128x2xf32>
    %c0_1 = arith.constant 0 : index
    %c0_2 = arith.constant 0 : index
    %1 = vector.load %arg2[%c0_1, %c0_2] : memref<2x256xf32, #tpu.memory_space<vmem>>, vector<2x256xf32>
    %2 = vector.extract_strided_slice %0 {offsets = [0, 0], sizes = [128, 1], strides = [1, 1]} : vector<128x2xf32> to vector<128x1xf32>
    %3 = vector.extract_strided_slice %1 {offsets = [0, 0], sizes = [1, 256], strides = [1, 1]} : vector<2x256xf32> to vector<1x256xf32>
    %4 = vector.broadcast %2 : vector<128x1xf32> to vector<128x256xf32>
    %5 = vector.broadcast %3 : vector<1x256xf32> to vector<128x256xf32>
    %6 = arith.mulf %4, %5 : vector<128x256xf32>
    %7 = vector.extract_strided_slice %0 {offsets = [0, 1], sizes = [128, 1], strides = [1, 1]} : vector<128x2xf32> to vector<128x1xf32>
    %8 = vector.extract_strided_slice %1 {offsets = [1, 0], sizes = [1, 256], strides = [1, 1]} : vector<2x256xf32> to vector<1x256xf32>
    %9 = vector.broadcast %7 : vector<128x1xf32> to vector<128x256xf32>
    %10 = vector.broadcast %8 : vector<1x256xf32> to vector<128x256xf32>
    %11 = arith.mulf %9, %10 : vector<128x256xf32>
    %12 = arith.addf %6, %11 : vector<128x256xf32>
    %c0_3 = arith.constant 0 : index
    %c0_4 = arith.constant 0 : index
    %13 = vector.load %arg3[%c0_3, %c0_4] : memref<1x256xf32, #tpu.memory_space<vmem>>, vector<1x256xf32>
    %14 = vector.broadcast %13 : vector<1x256xf32> to vector<128x256xf32>
    %15 = arith.addf %12, %14 : vector<128x256xf32>
    %cst = arith.constant 0.000000e+00 : f32
    %16 = vector.broadcast %cst : f32 to vector<128x256xf32>
    %17 = arith.maximumf %15, %16 : vector<128x256xf32>
    %c0_5 = arith.constant 0 : index
    %c0_6 = arith.constant 0 : index
    %18 = vector.load %arg4[%c0_5, %c0_6] : memref<256x256xf32, #tpu.memory_space<vmem>>, vector<256x256xf32>
    %cst_7 = arith.constant dense<0.000000e+00> : vector<128x256xf32>
    %19 = tpu.matmul %17, %18, %cst_7 {dimension_numbers = #tpu.dot_dimension_numbers<[1], [0], [0], [1], [0, 0, 1, 1], [], []>} : vector<128x256xf32>, vector<256x256xf32>, vector<128x256xf32> -> vector<128x256xf32>
    %c0_8 = arith.constant 0 : index
    %c0_9 = arith.constant 0 : index
    %20 = vector.load %arg5[%c0_8, %c0_9] : memref<1x256xf32, #tpu.memory_space<vmem>>, vector<1x256xf32>
    %21 = vector.broadcast %20 : vector<1x256xf32> to vector<128x256xf32>
    %22 = arith.addf %19, %21 : vector<128x256xf32>
    %cst_10 = arith.constant 0.000000e+00 : f32
    %23 = vector.broadcast %cst_10 : f32 to vector<128x256xf32>
    %24 = arith.maximumf %22, %23 : vector<128x256xf32>
    %c0_11 = arith.constant 0 : index
    %c0_12 = arith.constant 0 : index
    %25 = vector.load %arg6[%c0_11, %c0_12] : memref<256x256xf32, #tpu.memory_space<vmem>>, vector<256x256xf32>
    %cst_13 = arith.constant dense<0.000000e+00> : vector<128x256xf32>
    %26 = tpu.matmul %24, %25, %cst_13 {dimension_numbers = #tpu.dot_dimension_numbers<[1], [0], [0], [1], [0, 0, 1, 1], [], []>} : vector<128x256xf32>, vector<256x256xf32>, vector<128x256xf32> -> vector<128x256xf32>
    %c0_14 = arith.constant 0 : index
    %c0_15 = arith.constant 0 : index
    %27 = vector.load %arg7[%c0_14, %c0_15] : memref<1x256xf32, #tpu.memory_space<vmem>>, vector<1x256xf32>
    %28 = vector.broadcast %27 : vector<1x256xf32> to vector<128x256xf32>
    %29 = arith.addf %26, %28 : vector<128x256xf32>
    %cst_16 = arith.constant 0.000000e+00 : f32
    %30 = vector.broadcast %cst_16 : f32 to vector<128x256xf32>
    %31 = arith.maximumf %29, %30 : vector<128x256xf32>
    %c0_17 = arith.constant 0 : index
    %c0_18 = arith.constant 0 : index
    %32 = vector.load %arg8[%c0_17, %c0_18] : memref<256x256xf32, #tpu.memory_space<vmem>>, vector<256x256xf32>
    %cst_19 = arith.constant dense<0.000000e+00> : vector<128x256xf32>
    %33 = tpu.matmul %31, %32, %cst_19 {dimension_numbers = #tpu.dot_dimension_numbers<[1], [0], [0], [1], [0, 0, 1, 1], [], []>} : vector<128x256xf32>, vector<256x256xf32>, vector<128x256xf32> -> vector<128x256xf32>
    %c0_20 = arith.constant 0 : index
    %c0_21 = arith.constant 0 : index
    %34 = vector.load %arg9[%c0_20, %c0_21] : memref<1x256xf32, #tpu.memory_space<vmem>>, vector<1x256xf32>
    %35 = vector.broadcast %34 : vector<1x256xf32> to vector<128x256xf32>
    %36 = arith.addf %33, %35 : vector<128x256xf32>
    %cst_22 = arith.constant 0.000000e+00 : f32
    %37 = vector.broadcast %cst_22 : f32 to vector<128x256xf32>
    %38 = arith.maximumf %36, %37 : vector<128x256xf32>
    %c0_23 = arith.constant 0 : index
    %c0_24 = arith.constant 0 : index
    %39 = vector.load %arg10[%c0_23, %c0_24] : memref<1x256xf32, #tpu.memory_space<vmem>>, vector<1x256xf32>
    %40 = vector.broadcast %39 : vector<1x256xf32> to vector<128x256xf32>
    %41 = arith.mulf %38, %40 : vector<128x256xf32>
    %cst_25 = arith.constant dense<0.000000e+00> : vector<128xf32>
    %42 = vector.multi_reduction <add>, %41, %cst_25 [1] : vector<128x256xf32> to vector<128xf32>
    %43 = vector.shape_cast %42 : vector<128xf32> to vector<1x128xf32>
    %c0_26 = arith.constant 0 : index
    %c0_27 = arith.constant 0 : index
    %44 = memref.load %arg11[%c0_26, %c0_27] : memref<1x1xf32, #tpu.memory_space<smem>>
    %45 = vector.broadcast %44 : f32 to vector<1x128xf32>
    %46 = arith.addf %43, %45 : vector<1x128xf32>
    %c0_28 = arith.constant 0 : index
    %c0_29 = arith.constant 0 : index
    %47 = vector.load %arg12[%c0_28, %c0_29] : memref<1x128xf32, #tpu.memory_space<vmem>>, vector<1x128xf32>
    tpu.vector_store %arg12[%c0_28, %c0_29], %46 {strides = array<i32>} : memref<1x128xf32, #tpu.memory_space<vmem>>, vector<1x128xf32>,
    return
  }
  func.func @transform_0(%arg0: i32) -> (i32, i32) {
    %c0_i32 = arith.constant 0 : i32
    %c0_i32_0 = arith.constant 0 : i32
    return %arg0, %c0_i32 : i32, i32
  }
  func.func @transform_1(%arg0: i32) -> (i32, i32) {
    %c0_i32 = arith.constant 0 : i32
    %c0_i32_0 = arith.constant 0 : i32
    %c0_i32_1 = arith.constant 0 : i32
    return %c0_i32, %c0_i32_0 : i32, i32
  }
  func.func @transform_2(%arg0: i32) -> (i32, i32) {
    %c0_i32 = arith.constant 0 : i32
    %c0_i32_0 = arith.constant 0 : i32
    %c0_i32_1 = arith.constant 0 : i32
    return %c0_i32, %c0_i32_0 : i32, i32
  }
  func.func @transform_3(%arg0: i32) -> (i32, i32) {
    %c0_i32 = arith.constant 0 : i32
    %c0_i32_0 = arith.constant 0 : i32
    %c0_i32_1 = arith.constant 0 : i32
    return %c0_i32, %c0_i32_0 : i32, i32
  }
  func.func @transform_4(%arg0: i32) -> (i32, i32) {
    %c0_i32 = arith.constant 0 : i32
    %c0_i32_0 = arith.constant 0 : i32
    %c0_i32_1 = arith.constant 0 : i32
    return %c0_i32, %c0_i32_0 : i32, i32
  }
  func.func @transform_5(%arg0: i32) -> (i32, i32) {
    %c0_i32 = arith.constant 0 : i32
    %c0_i32_0 = arith.constant 0 : i32
    %c0_i32_1 = arith.constant 0 : i32
    return %c0_i32, %c0_i32_0 : i32, i32
  }
  func.func @transform_6(%arg0: i32) -> (i32, i32) {
    %c0_i32 = arith.constant 0 : i32
    %c0_i32_0 = arith.constant 0 : i32
    %c0_i32_1 = arith.constant 0 : i32
    return %c0_i32, %c0_i32_0 : i32, i32
  }
  func.func @transform_7(%arg0: i32) -> (i32, i32) {
    %c0_i32 = arith.constant 0 : i32
    %c0_i32_0 = arith.constant 0 : i32
    %c0_i32_1 = arith.constant 0 : i32
    return %c0_i32, %c0_i32_0 : i32, i32
  }
  func.func @transform_8(%arg0: i32) -> (i32, i32) {
    %c0_i32 = arith.constant 0 : i32
    %c0_i32_0 = arith.constant 0 : i32
    %c0_i32_1 = arith.constant 0 : i32
    return %c0_i32, %c0_i32_0 : i32, i32
  }
  func.func @transform_9(%arg0: i32) -> (i32, i32) {
    %c0_i32 = arith.constant 0 : i32
    %c0_i32_0 = arith.constant 0 : i32
    %c0_i32_1 = arith.constant 0 : i32
    return %c0_i32, %c0_i32_0 : i32, i32
  }
  func.func @transform_10(%arg0: i32) -> (i32, i32) {
    %c0_i32 = arith.constant 0 : i32
    %c0_i32_0 = arith.constant 0 : i32
    %c0_i32_1 = arith.constant 0 : i32
    return %c0_i32, %c0_i32_0 : i32, i32
  }
  func.func @transform_11(%arg0: i32) -> (i32, i32) {
    %c0_i32 = arith.constant 0 : i32
    %c0_i32_0 = arith.constant 0 : i32
    return %c0_i32, %arg0 : i32, i32
  }
}

</mosaic_0001>

<llo_original>
// kernel: mlp_forward.1
$region0: #{mlp_forward.1}
  #allocation0 [shape = 'u32[]', space=smem, size = 0x4, offset = 0x4, fixed_abs, tag = 'smem constant byte address 0x4 - core index']
  #allocation1 [shape = 'u32[144,128]{1,0:T(1,128)}', space=vmem, size = 0x12000, scoped, tag = 'internal scratch']
  #allocation2 [shape = 'f32[1,1]{1,0:T(1,128)S(6)}', space=smem, size = 0x200, scoped, tag = 'scoped memory for mlp_forward.1']
  %s0 = inlined_call_operand.vmem [shape: f32[256,2], index: 0, kind: input, shape index: {}]
  %s1 = inlined_call_operand.vmem [shape: f32[2,256], index: 1, kind: input, shape index: {}]
  %s2 = inlined_call_operand.vmem [shape: f32[1,256], index: 2, kind: input, shape index: {}]
  %s3 = inlined_call_operand.vmem [shape: f32[256,256], index: 3, kind: input, shape index: {}]
  %s4 = inlined_call_operand.vmem [shape: f32[1,256], index: 4, kind: input, shape index: {}]
  %s5 = inlined_call_operand.hbm [shape: f32[256,256], index: 5, kind: input, shape index: {}]
  %s6 = inlined_call_operand.vmem [shape: f32[1,256], index: 6, kind: input, shape index: {}]
  %s7 = inlined_call_operand.hbm [shape: f32[256,256], index: 7, kind: input, shape index: {}]
  %s8 = inlined_call_operand.vmem [shape: f32[1,256], index: 8, kind: input, shape index: {}]
  %s9 = inlined_call_operand.vmem [shape: f32[1,256], index: 9, kind: input, shape index: {}]
  %s10 = inlined_call_operand.<no memory space> [shape: f32[1,1], index: 10, kind: input, shape index: {}]
  %s11 = inlined_call_operand.vmem [shape: f32[1,256], index: 11, kind: output, shape index: {}]
  %s12 = sld [smem:[#allocation0]]
  $region85: #{mlp_forward.1} parent=0
    _
  %s14 = ssub.s32 1, %s12
  %s15 = scalar_select 0, %s14, %s12
  %16 = sst [smem:[#allocation2]] %s10
  $region1: #{mlp_forward.1} parent=0
    #allocation3 [shape = 'u8[262144]{0}', space=vmem, size = 0x40000, scoped, tag = 'input window, operand 5, single buffered']
    #allocation4 [shape = 's32[2]{0}', space=sflag, size = 0x8, scoped, tag = 'scoped memory for mlp_forward.1']
    #allocation5 [shape = 'u8[262144]{0}', space=vmem, size = 0x40000, scoped, tag = 'input window, operand 7, single buffered']
    #allocation6 [shape = 's32[1]{0}', space=sflag, size = 0x4, scoped, tag = 'scoped memory for mlp_forward.1']
    %17 = vsyncpa [#allocation4], 0
    %18 = vsyncpa [#allocation6], 0
    loop: start=0, step=1, limit=4
    $region2: #{mlp_forward.1} parent=1 // loop_pre_header
      _
    $region3: #{mlp_forward.1} parent=1 // loop_header
      %s20 = sphi 0, %s24
      %p21 = scmp.ge.s32.totalorder %s20, 4
      %s30 = sphi 0, %s32
      %s33 = sphi 0, %s30
      %s34 = sphi 0, %s33
      %s50 = sphi 0, %s34
      %s54 = sphi 0, %s54
      %s56 = sphi 0, %s54
      %s57 = sphi 0, %s56
      %s71 = sphi 0, %s57
      %s75 = sphi 0, %s75
      %s77 = sphi 0, %s75
      %s78 = sphi 0, %s77
      %s92 = sphi 0, %s78
      %s96 = sphi 0, %s96
      %s98 = sphi 0, %s96
      %s99 = sphi 0, %s98
      %s113 = sphi 0, %s99
      %s117 = sphi 0, %s117
      %s119 = sphi 0, %s117
      %s120 = sphi 0, %s119
      %s134 = sphi 0, %s120
      %s138 = sphi 0, %s138
      %s140 = sphi 0, %s138
      %s141 = sphi 0, %s140
      %s155 = sphi 0, %s141
      %s159 = sphi 0, %s159
      %s161 = sphi 0, %s159
      %s162 = sphi 0, %s161
      %s176 = sphi 0, %s162
      %s180 = sphi 0, %s180
      %s182 = sphi 0, %s180
      %s183 = sphi 0, %s182
      %s197 = sphi 0, %s183
      %s201 = sphi 0, %s201
      %s203 = sphi 0, %s201
      %s204 = sphi 0, %s203
      %s218 = sphi 0, %s204
      %s222 = sphi 0, %s222
      %s224 = sphi 0, %s222
      %s225 = sphi 0, %s224
      %s239 = sphi 0, %s225
      %s243 = sphi 0, %s243
      %s245 = sphi 0, %s243
      %s246 = sphi 0, %s245
      %s260 = sphi 0, %s246
      %s266 = sphi 0, %s268
      %s269 = sphi 0, %s266
      %s270 = sphi 0, %s269
      %s286 = sphi 0, %s270
    $region4: #{mlp_forward.1} parent=1 // loop_header_branch
      %23 = sbr.rel (%p21) target = $region8
    $region5: #{mlp_forward.1} parent=1 // loop_body
      %s25 = ssub.s32 %s20, 1
      %s26 = ssub.s32 %s20, 2
      %s27 = sadd.s32 %s20, 1
      %s28 = ssub.s32 %s20, %s27
      %p29 = scmp.eq.s32.totalorder %s28, 0
      %s31 = sadd.s32 %s30, 1
      %s32 = scalar_select %p29, %s30, %s31
      %p35 = pneg %p29
      %p36 = scmp.eq.s32.totalorder %s20, 1
      %p37 = por %p35, %p36
      %p38 = scmp.ne.s32.totalorder %s30, %s33
      %p39 = scmp.eq.s32.totalorder %s20, 0
      %p40 = por %p38, %p39
      %p41 = scmp.ne.s32.totalorder %s30, %s33
      %p42 = scmp.eq.s32.totalorder %s25, 1
      %p43 = por %p41, %p42
      %p44 = scmp.ne.s32.totalorder %s33, %s34
      %p45 = scmp.eq.s32.totalorder %s25, 0
      %p46 = por %p44, %p45
      %p47 = scmp.ne.s32.totalorder %s33, %s34
      %p48 = scmp.eq.s32.totalorder %s26, 1
      %p49 = por %p47, %p48
      %p51 = scmp.ne.s32.totalorder %s34, %s50
      %p52 = scmp.eq.s32.totalorder %s26, 0
      %p53 = por %p51, %p52
      %s55 = sadd.s32 %s54, 1
      %p58 = scmp.eq.s32.totalorder %s20, 1
      %p59 = scmp.ne.s32.totalorder %s54, %s56
      %p60 = scmp.eq.s32.totalorder %s20, 0
      %p61 = por %p59, %p60
      %p62 = scmp.ne.s32.totalorder %s54, %s56
      %p63 = scmp.eq.s32.totalorder %s25, 1
      %p64 = por %p62, %p63
      %p65 = scmp.ne.s32.totalorder %s56, %s57
      %p66 = scmp.eq.s32.totalorder %s25, 0
      %p67 = por %p65, %p66
      %p68 = scmp.ne.s32.totalorder %s56, %s57
      %p69 = scmp.eq.s32.totalorder %s26, 1
      %p70 = por %p68, %p69
      %p72 = scmp.ne.s32.totalorder %s57, %s71
      %p73 = scmp.eq.s32.totalorder %s26, 0
      %p74 = por %p72, %p73
      %s76 = sadd.s32 %s75, 1
      %p79 = scmp.eq.s32.totalorder %s20, 1
      %p80 = scmp.ne.s32.totalorder %s75, %s77
      %p81 = scmp.eq.s32.totalorder %s20, 0
      %p82 = por %p80, %p81
      %p83 = scmp.ne.s32.totalorder %s75, %s77
      %p84 = scmp.eq.s32.totalorder %s25, 1
      %p85 = por %p83, %p84
      %p86 = scmp.ne.s32.totalorder %s77, %s78
      %p87 = scmp.eq.s32.totalorder %s25, 0
      %p88 = por %p86, %p87
      %p89 = scmp.ne.s32.totalorder %s77, %s78
      %p90 = scmp.eq.s32.totalorder %s26, 1
      %p91 = por %p89, %p90
      %p93 = scmp.ne.s32.totalorder %s78, %s92
      %p94 = scmp.eq.s32.totalorder %s26, 0
      %p95 = por %p93, %p94
      %s97 = sadd.s32 %s96, 1
      %p100 = scmp.eq.s32.totalorder %s20, 1
      %p101 = scmp.ne.s32.totalorder %s96, %s98
      %p102 = scmp.eq.s32.totalorder %s20, 0
      %p103 = por %p101, %p102
      %p104 = scmp.ne.s32.totalorder %s96, %s98
      %p105 = scmp.eq.s32.totalorder %s25, 1
      %p106 = por %p104, %p105
      %p107 = scmp.ne.s32.totalorder %s98, %s99
      %p108 = scmp.eq.s32.totalorder %s25, 0
      %p109 = por %p107, %p108
      %p110 = scmp.ne.s32.totalorder %s98, %s99
      %p111 = scmp.eq.s32.totalorder %s26, 1
      %p112 = por %p110, %p111
      %p114 = scmp.ne.s32.totalorder %s99, %s113
      %p115 = scmp.eq.s32.totalorder %s26, 0
      %p116 = por %p114, %p115
      %s118 = sadd.s32 %s117, 1
      %p121 = scmp.eq.s32.totalorder %s20, 1
      %p122 = scmp.ne.s32.totalorder %s117, %s119
      %p123 = scmp.eq.s32.totalorder %s20, 0
      %p124 = por %p122, %p123
      %p125 = scmp.ne.s32.totalorder %s117, %s119
      %p126 = scmp.eq.s32.totalorder %s25, 1
      %p127 = por %p125, %p126
      %p128 = scmp.ne.s32.totalorder %s119, %s120
      %p129 = scmp.eq.s32.totalorder %s25, 0
      %p130 = por %p128, %p129
      %p131 = scmp.ne.s32.totalorder %s119, %s120
      %p132 = scmp.eq.s32.totalorder %s26, 1
      %p133 = por %p131, %p132
      %p135 = scmp.ne.s32.totalorder %s120, %s134
      %p136 = scmp.eq.s32.totalorder %s26, 0
      %p137 = por %p135, %p136
      %s139 = sadd.s32 %s138, 1
      %p142 = scmp.eq.s32.totalorder %s20, 1
      %p143 = scmp.ne.s32.totalorder %s138, %s140
      %p144 = scmp.eq.s32.totalorder %s20, 0
      %p145 = por %p143, %p144
      %p146 = scmp.ne.s32.totalorder %s138, %s140
      %p147 = scmp.eq.s32.totalorder %s25, 1
      %p148 = por %p146, %p147
      %p149 = scmp.ne.s32.totalorder %s140, %s141
      %p150 = scmp.eq.s32.totalorder %s25, 0
      %p151 = por %p149, %p150
      %p152 = scmp.ne.s32.totalorder %s140, %s141
      %p153 = scmp.eq.s32.totalorder %s26, 1
      %p154 = por %p152, %p153
      %p156 = scmp.ne.s32.totalorder %s141, %s155
      %p157 = scmp.eq.s32.totalorder %s26, 0
      %p158 = por %p156, %p157
      %s160 = sadd.s32 %s159, 1
      %p163 = scmp.eq.s32.totalorder %s20, 1
      %p164 = scmp.ne.s32.totalorder %s159, %s161
      %p165 = scmp.eq.s32.totalorder %s20, 0
      %p166 = por %p164, %p165
      %p167 = scmp.ne.s32.totalorder %s159, %s161
      %p168 = scmp.eq.s32.totalorder %s25, 1
      %p169 = por %p167, %p168
      %p170 = scmp.ne.s32.totalorder %s161, %s162
      %p171 = scmp.eq.s32.totalorder %s25, 0
      %p172 = por %p170, %p171
      %p173 = scmp.ne.s32.totalorder %s161, %s162
      %p174 = scmp.eq.s32.totalorder %s26, 1
      %p175 = por %p173, %p174
      %p177 = scmp.ne.s32.totalorder %s162, %s176
      %p178 = scmp.eq.s32.totalorder %s26, 0
      %p179 = por %p177, %p178
      %s181 = sadd.s32 %s180, 1
      %p184 = scmp.eq.s32.totalorder %s20, 1
      %p185 = scmp.ne.s32.totalorder %s180, %s182
      %p186 = scmp.eq.s32.totalorder %s20, 0
      %p187 = por %p185, %p186
      %p188 = scmp.ne.s32.totalorder %s180, %s182
      %p189 = scmp.eq.s32.totalorder %s25, 1
      %p190 = por %p188, %p189
      %p191 = scmp.ne.s32.totalorder %s182, %s183
      %p192 = scmp.eq.s32.totalorder %s25, 0
      %p193 = por %p191, %p192
      %p194 = scmp.ne.s32.totalorder %s182, %s183
      %p195 = scmp.eq.s32.totalorder %s26, 1
      %p196 = por %p194, %p195
      %p198 = scmp.ne.s32.totalorder %s183, %s197
      %p199 = scmp.eq.s32.totalorder %s26, 0
      %p200 = por %p198, %p199
      %s202 = sadd.s32 %s201, 1
      %p205 = scmp.eq.s32.totalorder %s20, 1
      %p206 = scmp.ne.s32.totalorder %s201, %s203
      %p207 = scmp.eq.s32.totalorder %s20, 0
      %p208 = por %p206, %p207
      %p209 = scmp.ne.s32.totalorder %s201, %s203
      %p210 = scmp.eq.s32.totalorder %s25, 1
      %p211 = por %p209, %p210
      %p212 = scmp.ne.s32.totalorder %s203, %s204
      %p213 = scmp.eq.s32.totalorder %s25, 0
      %p214 = por %p212, %p213
      %p215 = scmp.ne.s32.totalorder %s203, %s204
      %p216 = scmp.eq.s32.totalorder %s26, 1
      %p217 = por %p215, %p216
      %p219 = scmp.ne.s32.totalorder %s204, %s218
      %p220 = scmp.eq.s32.totalorder %s26, 0
      %p221 = por %p219, %p220
      %s223 = sadd.s32 %s222, 1
      %p226 = scmp.eq.s32.totalorder %s20, 1
      %p227 = scmp.ne.s32.totalorder %s222, %s224
      %p228 = scmp.eq.s32.totalorder %s20, 0
      %p229 = por %p227, %p228
      %p230 = scmp.ne.s32.totalorder %s222, %s224
      %p231 = scmp.eq.s32.totalorder %s25, 1
      %p232 = por %p230, %p231
      %p233 = scmp.ne.s32.totalorder %s224, %s225
      %p234 = scmp.eq.s32.totalorder %s25, 0
      %p235 = por %p233, %p234
      %p236 = scmp.ne.s32.totalorder %s224, %s225
      %p237 = scmp.eq.s32.totalorder %s26, 1
      %p238 = por %p236, %p237
      %p240 = scmp.ne.s32.totalorder %s225, %s239
      %p241 = scmp.eq.s32.totalorder %s26, 0
      %p242 = por %p240, %p241
      %s244 = sadd.s32 %s243, 1
      %p247 = scmp.eq.s32.totalorder %s20, 1
      %p248 = scmp.ne.s32.totalorder %s243, %s245
      %p249 = scmp.eq.s32.totalorder %s20, 0
      %p250 = por %p248, %p249
      %p251 = scmp.ne.s32.totalorder %s243, %s245
      %p252 = scmp.eq.s32.totalorder %s25, 1
      %p253 = por %p251, %p252
      %p254 = scmp.ne.s32.totalorder %s245, %s246
      %p255 = scmp.eq.s32.totalorder %s25, 0
      %p256 = por %p254, %p255
      %p257 = scmp.ne.s32.totalorder %s245, %s246
      %p258 = scmp.eq.s32.totalorder %s26, 1
      %p259 = por %p257, %p258
      %p261 = scmp.ne.s32.totalorder %s246, %s260
      %p262 = scmp.eq.s32.totalorder %s26, 0
      %p263 = por %p261, %p262
      %s264 = ssub.s32 %s20, %s27
      %p265 = scmp.eq.s32.totalorder %s264, 0
      %s267 = sadd.s32 %s266, 1
      %s268 = scalar_select %p265, %s266, %s267
      %p271 = pneg %p265
      %p272 = scmp.eq.s32.totalorder %s20, 1
      %p273 = por %p271, %p272
      %p274 = scmp.ne.s32.totalorder %s266, %s269
      %p275 = scmp.eq.s32.totalorder %s20, 0
      %p276 = por %p274, %p275
      %p277 = scmp.ne.s32.totalorder %s266, %s269
      %p278 = scmp.eq.s32.totalorder %s25, 1
      %p279 = por %p277, %p278
      %p280 = scmp.ne.s32.totalorder %s269, %s270
      %p281 = scmp.eq.s32.totalorder %s25, 0
      %p282 = por %p280, %p281
      %p283 = scmp.ne.s32.totalorder %s269, %s270
      %p284 = scmp.eq.s32.totalorder %s26, 1
      %p285 = por %p283, %p284
      %p287 = scmp.ne.s32.totalorder %s270, %s286
      %p288 = scmp.eq.s32.totalorder %s26, 0
      %p289 = por %p287, %p288
      %p290 = scmp.le.s32.totalorder 1, %s20
      %p291 = scmp.lt.s32.totalorder %s20, 3
      %p292 = pnand %p290, %p291
      %p293 = pneg %p292
      // Predicated region
      $region9: #{mlp_forward.1} parent=5 // pred_check
        _
      $region10: #{mlp_forward.1} parent=5 // pred_check_branch
        %295 = sbr.rel (%p292) target = $region12
      $region11: #{mlp_forward.1} parent=5 // pred_region
        %s296 = ssub.s32 %s20, 1
        // Predicated region
        $region13: #{mlp_forward.1} parent=11 // pred_check
          %p297 = pneg %p67
        $region14: #{mlp_forward.1} parent=11 // pred_check_branch
          %299 = sbr.rel (%p297) target = $region16
        $region15: #{mlp_forward.1} parent=11 // pred_region
          _
        $region16: #{mlp_forward.1} parent=11 // pred_fallthru
          _
        // Predicated region
        $region17: #{mlp_forward.1} parent=11 // pred_check
          %p300 = pneg %p88
        $region18: #{mlp_forward.1} parent=11 // pred_check_branch
          %302 = sbr.rel (%p300) target = $region20
        $region19: #{mlp_forward.1} parent=11 // pred_region
          _
        $region20: #{mlp_forward.1} parent=11 // pred_fallthru
          _
        // Predicated region
        $region21: #{mlp_forward.1} parent=11 // pred_check
          %p303 = pneg %p109
        $region22: #{mlp_forward.1} parent=11 // pred_check_branch
          %305 = sbr.rel (%p303) target = $region24
        $region23: #{mlp_forward.1} parent=11 // pred_region
          _
        $region24: #{mlp_forward.1} parent=11 // pred_fallthru
          _
        // Predicated region
        $region25: #{mlp_forward.1} parent=11 // pred_check
          %p306 = pneg %p130
        $region26: #{mlp_forward.1} parent=11 // pred_check_branch
          %308 = sbr.rel (%p306) target = $region28
        $region27: #{mlp_forward.1} parent=11 // pred_region
          _
        $region28: #{mlp_forward.1} parent=11 // pred_fallthru
          _
        // Predicated region
        $region29: #{mlp_forward.1} parent=11 // pred_check
          %p309 = pneg %p151
        $region30: #{mlp_forward.1} parent=11 // pred_check_branch
          %311 = sbr.rel (%p309) target = $region32
        $region31: #{mlp_forward.1} parent=11 // pred_region
          %s313 = ssub.s32 8192, 8192
          %314 = vsyncadd [#allocation4], %s313
          %s315 = sshll.u32 [#allocation3], 4
          %s316 = int_to_ptr.vmem [resolvable:$true] %s315
          %321 = dma.hbm_to_vmem [thread:$0]  %s5, 8192, %s316, [#allocation4], 256, 256, 16
        $region32: #{mlp_forward.1} parent=11 // pred_fallthru
          _
        // Predicated region
        $region33: #{mlp_forward.1} parent=11 // pred_check
          %p322 = pneg %p172
        $region34: #{mlp_forward.1} parent=11 // pred_check_branch
          %324 = sbr.rel (%p322) target = $region36
        $region35: #{mlp_forward.1} parent=11 // pred_region
          _
        $region36: #{mlp_forward.1} parent=11 // pred_fallthru
          _
        // Predicated region
        $region37: #{mlp_forward.1} parent=11 // pred_check
          %p325 = pneg %p193
        $region38: #{mlp_forward.1} parent=11 // pred_check_branch
          %327 = sbr.rel (%p325) target = $region40
        $region39: #{mlp_forward.1} parent=11 // pred_region
          %s329 = ssub.s32 8192, 8192
          %330 = vsyncadd [#allocation6], %s329
          %s331 = sshll.u32 [#allocation5], 4
          %s332 = int_to_ptr.vmem [resolvable:$true] %s331
          %337 = dma.hbm_to_vmem [thread:$0]  %s7, 8192, %s332, [#allocation6], 256, 256, 16
        $region40: #{mlp_forward.1} parent=11 // pred_fallthru
          _
        // Predicated region
        $region41: #{mlp_forward.1} parent=11 // pred_check
          %p338 = pneg %p214
        $region42: #{mlp_forward.1} parent=11 // pred_check_branch
          %340 = sbr.rel (%p338) target = $region44
        $region43: #{mlp_forward.1} parent=11 // pred_region
          _
        $region44: #{mlp_forward.1} parent=11 // pred_fallthru
          _
        // Predicated region
        $region45: #{mlp_forward.1} parent=11 // pred_check
          %p341 = pneg %p235
        $region46: #{mlp_forward.1} parent=11 // pred_check_branch
          %343 = sbr.rel (%p341) target = $region48
        $region47: #{mlp_forward.1} parent=11 // pred_region
          _
        $region48: #{mlp_forward.1} parent=11 // pred_fallthru
          _
        // Predicated region
        $region49: #{mlp_forward.1} parent=11 // pred_check
          %p344 = pneg %p256
        $region50: #{mlp_forward.1} parent=11 // pred_check_branch
          %346 = sbr.rel (%p344) target = $region52
        $region51: #{mlp_forward.1} parent=11 // pred_region
          _
        $region52: #{mlp_forward.1} parent=11 // pred_fallthru
          _
      $region12: #{mlp_forward.1} parent=5 // pred_fallthru
        _
      %p347 = scmp.lt.s32.totalorder %s20, 2
      // Predicated region
      $region53: #{mlp_forward.1} parent=5 // pred_check
        %p348 = pneg %p347
      $region54: #{mlp_forward.1} parent=5 // pred_check_branch
        %350 = sbr.rel (%p348) target = $region56
      $region55: #{mlp_forward.1} parent=5 // pred_region
        // Predicated region
        $region57: #{mlp_forward.1} parent=55 // pred_check
          %p351 = pneg %p40
        $region58: #{mlp_forward.1} parent=55 // pred_check_branch
          %353 = sbr.rel (%p351) target = $region60
        $region59: #{mlp_forward.1} parent=55 // pred_region
          %s354 = smul.u32 16, %s20
          %p355 = scmp.lt.s32.totalorder %s354, 31
          %s356 = scalar_select %p355, %s354, 31
          %s357 = smul.addr %s356, 8
          %s358 = scalar_lea.vmem %s0, %s357
          %s359 = smul.u32 16, %s20
        $region60: #{mlp_forward.1} parent=55 // pred_fallthru
          _
      $region56: #{mlp_forward.1} parent=5 // pred_fallthru
        _
      %p360 = scmp.le.s32.totalorder 1, %s20
      %p361 = scmp.lt.s32.totalorder %s20, 3
      %p362 = pnand %p360, %p361
      %p363 = pneg %p362
      // Predicated region
      $region61: #{mlp_forward.1} parent=5 // pred_check
        _
      $region62: #{mlp_forward.1} parent=5 // pred_check_branch
        %365 = sbr.rel (%p362) target = $region64
      $region63: #{mlp_forward.1} parent=5 // pred_region
        %s366 = ssub.s32 %s20, 1
        // Predicated region
        $region65: #{mlp_forward.1} parent=63 // pred_check
          %p367 = pneg %p151
        $region66: #{mlp_forward.1} parent=63 // pred_check_branch
          %369 = sbr.rel (%p367) target = $region68
        $region67: #{mlp_forward.1} parent=63 // pred_region
          %370 = dma.done [#allocation4], 8192
        $region68: #{mlp_forward.1} parent=63 // pred_fallthru
          _
        // Predicated region
        $region69: #{mlp_forward.1} parent=63 // pred_check
          %p371 = pneg %p193
        $region70: #{mlp_forward.1} parent=63 // pred_check_branch
          %373 = sbr.rel (%p371) target = $region72
        $region71: #{mlp_forward.1} parent=63 // pred_region
          %374 = dma.done [#allocation6], 8192
        $region72: #{mlp_forward.1} parent=63 // pred_fallthru
          _
        %s375 = smul.u32 16, %s25
        %p376 = scmp.lt.s32.totalorder %s375, 31
        %s377 = scalar_select %p376, %s375, 31
        %s378 = smul.addr %s377, 8
        %s379 = scalar_lea.vmem %s0, %s378
        %p380 = pneg %p46
        %p381 = pneg %p43
        %p382 = pneg %p67
        %p383 = pneg %p64
        %p384 = pneg %p88
        %p385 = pneg %p85
        %p386 = pneg %p109
        %p387 = pneg %p106
        %p388 = pneg %p130
        %p389 = pneg %p127
        %p390 = pneg %p151
        %p391 = pneg %p148
        %p392 = pneg %p172
        %p393 = pneg %p169
        %p394 = pneg %p193
        %p395 = pneg %p190
        %p396 = pneg %p214
        %p397 = pneg %p211
        %p398 = pneg %p235
        %p399 = pneg %p232
        %p400 = pneg %p256
        %p401 = pneg %p253
        %p402 = pneg %p282
        %p403 = pneg %p279
        %p404 = scmp.lt.s32.totalorder %s25, 1
        %s405 = scalar_select %p404, %s25, 1
        %s406 = scalar_lea.vmem %s11, %s405
        %s407 = smul.u32 16, %s25
        %p408 = scmp.lt.s32.totalorder %s407, 31
        %s409 = scalar_select %p408, %s407, 31
        %s410 = smul.addr %s409, 8
        %s411 = scalar_lea.vmem %s0, %s410
        %s412 = smul.u32 16, %s25
        %p413 = scmp.lt.s32.totalorder %s25, 1
        %s414 = scalar_select %p413, %s25, 1
        %s415 = scalar_lea.vmem %s11, %s414
        %v416 = vld [vmem:[%s411] sm:$0xff]
        %v417 = vld [vmem:[%s411 + $0x8] sm:$0xff]
        %v418 = vld [vmem:[%s411 + $0x10] sm:$0xff]
        %v419 = vld [vmem:[%s411 + $0x18] sm:$0xff]
        %v420 = vld [vmem:[%s411 + $0x20] sm:$0xff]
        %v421 = vld [vmem:[%s411 + $0x28] sm:$0xff]
        %v422 = vld [vmem:[%s411 + $0x30] sm:$0xff]
        %v423 = vld [vmem:[%s411 + $0x38] sm:$0xff]
        %v424 = vld [vmem:[%s411 + $0x40] sm:$0xff]
        %v425 = vld [vmem:[%s411 + $0x48] sm:$0xff]
        %v426 = vld [vmem:[%s411 + $0x50] sm:$0xff]
        %v427 = vld [vmem:[%s411 + $0x58] sm:$0xff]
        %v428 = vld [vmem:[%s411 + $0x60] sm:$0xff]
        %v429 = vld [vmem:[%s411 + $0x68] sm:$0xff]
        %v430 = vld [vmem:[%s411 + $0x70] sm:$0xff]
        %v431 = vld [vmem:[%s411 + $0x78] sm:$0xff]
        %v432 = vld [vmem:[%s1] sm:$0xf]
        %434 = vset.pattern.permute.xlu0 0
        %435 = vperm.xlu0 %434, %v416
        %v436 = vpop.permute.xlu0 %435
        %439 = vset.pattern.permute.xlu0 0
        %440 = vperm.xlu0 %439, %v417
        %v441 = vpop.permute.xlu0 %440
        %444 = vset.pattern.permute.xlu0 0
        %445 = vperm.xlu0 %444, %v418
        %v446 = vpop.permute.xlu0 %445
        %449 = vset.pattern.permute.xlu0 0
        %450 = vperm.xlu0 %449, %v419
        %v451 = vpop.permute.xlu0 %450
        %454 = vset.pattern.permute.xlu0 0
        %455 = vperm.xlu0 %454, %v420
        %v456 = vpop.permute.xlu0 %455
        %459 = vset.pattern.permute.xlu0 0
        %460 = vperm.xlu0 %459, %v421
        %v461 = vpop.permute.xlu0 %460
        %464 = vset.pattern.permute.xlu0 0
        %465 = vperm.xlu0 %464, %v422
        %v466 = vpop.permute.xlu0 %465
        %469 = vset.pattern.permute.xlu0 0
        %470 = vperm.xlu0 %469, %v423
        %v471 = vpop.permute.xlu0 %470
        %474 = vset.pattern.permute.xlu0 0
        %475 = vperm.xlu0 %474, %v424
        %v476 = vpop.permute.xlu0 %475
        %479 = vset.pattern.permute.xlu0 0
        %480 = vperm.xlu0 %479, %v425
        %v481 = vpop.permute.xlu0 %480
        %484 = vset.pattern.permute.xlu0 0
        %485 = vperm.xlu0 %484, %v426
        %v486 = vpop.permute.xlu0 %485
        %489 = vset.pattern.permute.xlu0 0
        %490 = vperm.xlu0 %489, %v427
        %v491 = vpop.permute.xlu0 %490
        %494 = vset.pattern.permute.xlu0 0
        %495 = vperm.xlu0 %494, %v428
        %v496 = vpop.permute.xlu0 %495
        %499 = vset.pattern.permute.xlu0 0
        %500 = vperm.xlu0 %499, %v429
        %v501 = vpop.permute.xlu0 %500
        %504 = vset.pattern.permute.xlu0 0
        %505 = vperm.xlu0 %504, %v430
        %v506 = vpop.permute.xlu0 %505
        %509 = vset.pattern.permute.xlu0 0
        %510 = vperm.xlu0 %509, %v431
        %v511 = vpop.permute.xlu0 %510
        %v514 = vlaneseq
        %v515 = vshrl.u32 %v514, 7
        %v516 = vsub.s32 0, %v515
        %v517 = vrot.slane %v432, %v516
        %v518 = vlaneseq
        %v519 = vshrl.u32 %v518, 7
        %v520 = vsub.s32 2, %v519
        %v521 = vrot.slane %v432, %v520
        %v524 = vlaneseq
        %v525 = vshrl.u32 %v524, 7
        %v526 = vsub.s32 0, %v525
        %v527 = vrot.slane %v517, %v526
        %v528 = vlaneseq
        %v529 = vshrl.u32 %v528, 7
        %v530 = vsub.s32 0, %v529
        %v531 = vrot.slane %v521, %v530
        %v532 = vmul.f32 %v436, %v527
        %v533 = vmul.f32 %v436, %v531
        %v534 = vmul.f32 %v441, %v527
        %v535 = vmul.f32 %v441, %v531
        %v536 = vmul.f32 %v446, %v527
        %v537 = vmul.f32 %v446, %v531
        %v538 = vmul.f32 %v451, %v527
        %v539 = vmul.f32 %v451, %v531
        %v540 = vmul.f32 %v456, %v527
        %v541 = vmul.f32 %v456, %v531
        %v542 = vmul.f32 %v461, %v527
        %v543 = vmul.f32 %v461, %v531
        %v544 = vmul.f32 %v466, %v527
        %v545 = vmul.f32 %v466, %v531
        %v546 = vmul.f32 %v471, %v527
        %v547 = vmul.f32 %v471, %v531
        %v548 = vmul.f32 %v476, %v527
        %v549 = vmul.f32 %v476, %v531
        %v550 = vmul.f32 %v481, %v527
        %v551 = vmul.f32 %v481, %v531
        %v552 = vmul.f32 %v486, %v527
        %v553 = vmul.f32 %v486, %v531
        %v554 = vmul.f32 %v491, %v527
        %v555 = vmul.f32 %v491, %v531
        %v556 = vmul.f32 %v496, %v527
        %v557 = vmul.f32 %v496, %v531
        %v558 = vmul.f32 %v501, %v527
        %v559 = vmul.f32 %v501, %v531
        %v560 = vmul.f32 %v506, %v527
        %v561 = vmul.f32 %v506, %v531
        %v562 = vmul.f32 %v511, %v527
        %v563 = vmul.f32 %v511, %v531
        %564 = vset.pattern.permute.xlu0 1
        %565 = vperm.xlu0 %564, %v416
        %v566 = vpop.permute.xlu0 %565
        %568 = vset.pattern.permute.xlu0 1
        %569 = vperm.xlu0 %568, %v417
        %v570 = vpop.permute.xlu0 %569
        %572 = vset.pattern.permute.xlu0 1
        %573 = vperm.xlu0 %572, %v418
        %v574 = vpop.permute.xlu0 %573
        %576 = vset.pattern.permute.xlu0 1
        %577 = vperm.xlu0 %576, %v419
        %v578 = vpop.permute.xlu0 %577
        %580 = vset.pattern.permute.xlu0 1
        %581 = vperm.xlu0 %580, %v420
        %v582 = vpop.permute.xlu0 %581
        %584 = vset.pattern.permute.xlu0 1
        %585 = vperm.xlu0 %584, %v421
        %v586 = vpop.permute.xlu0 %585
        %588 = vset.pattern.permute.xlu0 1
        %589 = vperm.xlu0 %588, %v422
        %v590 = vpop.permute.xlu0 %589
        %592 = vset.pattern.permute.xlu0 1
        %593 = vperm.xlu0 %592, %v423
        %v594 = vpop.permute.xlu0 %593
        %596 = vset.pattern.permute.xlu0 1
        %597 = vperm.xlu0 %596, %v424
        %v598 = vpop.permute.xlu0 %597
        %600 = vset.pattern.permute.xlu0 1
        %601 = vperm.xlu0 %600, %v425
        %v602 = vpop.permute.xlu0 %601
        %604 = vset.pattern.permute.xlu0 1
        %605 = vperm.xlu0 %604, %v426
        %v606 = vpop.permute.xlu0 %605
        %608 = vset.pattern.permute.xlu0 1
        %609 = vperm.xlu0 %608, %v427
        %v610 = vpop.permute.xlu0 %609
        %612 = vset.pattern.permute.xlu0 1
        %613 = vperm.xlu0 %612, %v428
        %v614 = vpop.permute.xlu0 %613
        %616 = vset.pattern.permute.xlu0 1
        %617 = vperm.xlu0 %616, %v429
        %v618 = vpop.permute.xlu0 %617
        %620 = vset.pattern.permute.xlu0 1
        %621 = vperm.xlu0 %620, %v430
        %v622 = vpop.permute.xlu0 %621
        %624 = vset.pattern.permute.xlu0 1
        %625 = vperm.xlu0 %624, %v431
        %v626 = vpop.permute.xlu0 %625
        %v628 = vlaneseq
        %v629 = vshrl.u32 %v628, 7
        %v630 = vsub.s32 1, %v629
        %v631 = vrot.slane %v432, %v630
        %v632 = vlaneseq
        %v633 = vshrl.u32 %v632, 7
        %v634 = vsub.s32 3, %v633
        %v635 = vrot.slane %v432, %v634
        %v638 = vlaneseq
        %v639 = vshrl.u32 %v638, 7
        %v640 = vsub.s32 1, %v639
        %v641 = vrot.slane %v631, %v640
        %v642 = vlaneseq
        %v643 = vshrl.u32 %v642, 7
        %v644 = vsub.s32 1, %v643
        %v645 = vrot.slane %v635, %v644
        %v646 = vmul.f32 %v566, %v641
        %v647 = vmul.f32 %v566, %v645
        %v648 = vmul.f32 %v570, %v641
        %v649 = vmul.f32 %v570, %v645
        %v650 = vmul.f32 %v574, %v641
        %v651 = vmul.f32 %v574, %v645
        %v652 = vmul.f32 %v578, %v641
        %v653 = vmul.f32 %v578, %v645
        %v654 = vmul.f32 %v582, %v641
        %v655 = vmul.f32 %v582, %v645
        %v656 = vmul.f32 %v586, %v641
        %v657 = vmul.f32 %v586, %v645
        %v658 = vmul.f32 %v590, %v641
        %v659 = vmul.f32 %v590, %v645
        %v660 = vmul.f32 %v594, %v641
        %v661 = vmul.f32 %v594, %v645
        %v662 = vmul.f32 %v598, %v641
        %v663 = vmul.f32 %v598, %v645
        %v664 = vmul.f32 %v602, %v641
        %v665 = vmul.f32 %v602, %v645
        %v666 = vmul.f32 %v606, %v641
        %v667 = vmul.f32 %v606, %v645
        %v668 = vmul.f32 %v610, %v641
        %v669 = vmul.f32 %v610, %v645
        %v670 = vmul.f32 %v614, %v641
        %v671 = vmul.f32 %v614, %v645
        %v672 = vmul.f32 %v618, %v641
        %v673 = vmul.f32 %v618, %v645
        %v674 = vmul.f32 %v622, %v641
        %v675 = vmul.f32 %v622, %v645
        %v676 = vmul.f32 %v626, %v641
        %v677 = vmul.f32 %v626, %v645
        %v678 = vadd.f32 %v532, %v646
        %v679 = vadd.f32 %v533, %v647
        %v680 = vadd.f32 %v534, %v648
        %v681 = vadd.f32 %v535, %v649
        %v682 = vadd.f32 %v536, %v650
        %v683 = vadd.f32 %v537, %v651
        %v684 = vadd.f32 %v538, %v652
        %v685 = vadd.f32 %v539, %v653
        %v686 = vadd.f32 %v540, %v654
        %v687 = vadd.f32 %v541, %v655
        %v688 = vadd.f32 %v542, %v656
        %v689 = vadd.f32 %v543, %v657
        %v690 = vadd.f32 %v544, %v658
        %v691 = vadd.f32 %v545, %v659
        %v692 = vadd.f32 %v546, %v660
        %v693 = vadd.f32 %v547, %v661
        %v694 = vadd.f32 %v548, %v662
        %v695 = vadd.f32 %v549, %v663
        %v696 = vadd.f32 %v550, %v664
        %v697 = vadd.f32 %v551, %v665
        %v698 = vadd.f32 %v552, %v666
        %v699 = vadd.f32 %v553, %v667
        %v700 = vadd.f32 %v554, %v668
        %v701 = vadd.f32 %v555, %v669
        %v702 = vadd.f32 %v556, %v670
        %v703 = vadd.f32 %v557, %v671
        %v704 = vadd.f32 %v558, %v672
        %v705 = vadd.f32 %v559, %v673
        %v706 = vadd.f32 %v560, %v674
        %v707 = vadd.f32 %v561, %v675
        %v708 = vadd.f32 %v562, %v676
        %v709 = vadd.f32 %v563, %v677
        %v710 = vld [vmem:[%s2] sm:$0x3]
        %v712 = vlaneseq
        %v713 = vshrl.u32 %v712, 7
        %v714 = vsub.s32 0, %v713
        %v715 = vrot.slane %v710, %v714
        %v716 = vlaneseq
        %v717 = vshrl.u32 %v716, 7
        %v718 = vsub.s32 1, %v717
        %v719 = vrot.slane %v710, %v718
        %v722 = vadd.f32 %v678, %v715
        %v723 = vadd.f32 %v679, %v719
        %v724 = vadd.f32 %v680, %v715
        %v725 = vadd.f32 %v681, %v719
        %v726 = vadd.f32 %v682, %v715
        %v727 = vadd.f32 %v683, %v719
        %v728 = vadd.f32 %v684, %v715
        %v729 = vadd.f32 %v685, %v719
        %v730 = vadd.f32 %v686, %v715
        %v731 = vadd.f32 %v687, %v719
        %v732 = vadd.f32 %v688, %v715
        %v733 = vadd.f32 %v689, %v719
        %v734 = vadd.f32 %v690, %v715
        %v735 = vadd.f32 %v691, %v719
        %v736 = vadd.f32 %v692, %v715
        %v737 = vadd.f32 %v693, %v719
        %v738 = vadd.f32 %v694, %v715
        %v739 = vadd.f32 %v695, %v719
        %v740 = vadd.f32 %v696, %v715
        %v741 = vadd.f32 %v697, %v719
        %v742 = vadd.f32 %v698, %v715
        %v743 = vadd.f32 %v699, %v719
        %v744 = vadd.f32 %v700, %v715
        %v745 = vadd.f32 %v701, %v719
        %v746 = vadd.f32 %v702, %v715
        %v747 = vadd.f32 %v703, %v719
        %v748 = vadd.f32 %v704, %v715
        %v749 = vadd.f32 %v705, %v719
        %v750 = vadd.f32 %v706, %v715
        %v751 = vadd.f32 %v707, %v719
        %v752 = vadd.f32 %v708, %v715
        %v753 = vadd.f32 %v709, %v719
        %v754 = vmax.f32 %v722, 0.0
        %v755 = vmax.f32 %v723, 0.0
        %v756 = vmax.f32 %v724, 0.0
        %v757 = vmax.f32 %v725, 0.0
        %v758 = vmax.f32 %v726, 0.0
        %v759 = vmax.f32 %v727, 0.0
        %v760 = vmax.f32 %v728, 0.0
        %v761 = vmax.f32 %v729, 0.0
        %v762 = vmax.f32 %v730, 0.0
        %v763 = vmax.f32 %v731, 0.0
        %v764 = vmax.f32 %v732, 0.0
        %v765 = vmax.f32 %v733, 0.0
        %v766 = vmax.f32 %v734, 0.0
        %v767 = vmax.f32 %v735, 0.0
        %v768 = vmax.f32 %v736, 0.0
        %v769 = vmax.f32 %v737, 0.0
        %v770 = vmax.f32 %v738, 0.0
        %v771 = vmax.f32 %v739, 0.0
        %v772 = vmax.f32 %v740, 0.0
        %v773 = vmax.f32 %v741, 0.0
        %v774 = vmax.f32 %v742, 0.0
        %v775 = vmax.f32 %v743, 0.0
        %v776 = vmax.f32 %v744, 0.0
        %v777 = vmax.f32 %v745, 0.0
        %v778 = vmax.f32 %v746, 0.0
        %v779 = vmax.f32 %v747, 0.0
        %v780 = vmax.f32 %v748, 0.0
        %v781 = vmax.f32 %v749, 0.0
        %v782 = vmax.f32 %v750, 0.0
        %v783 = vmax.f32 %v751, 0.0
        %v784 = vmax.f32 %v752, 0.0
        %v785 = vmax.f32 %v753, 0.0
        %v786 = vld [vmem:[%s3] sm:$0xff]
        %v787 = vld [vmem:[%s3 + $0x8] sm:$0xff]
        %v788 = vld [vmem:[%s3 + $0x10] sm:$0xff]
        %v789 = vld [vmem:[%s3 + $0x18] sm:$0xff]
        %v790 = vld [vmem:[%s3 + $0x20] sm:$0xff]
        %v791 = vld [vmem:[%s3 + $0x28] sm:$0xff]
        %v792 = vld [vmem:[%s3 + $0x30] sm:$0xff]
        %v793 = vld [vmem:[%s3 + $0x38] sm:$0xff]
        %v794 = vld [vmem:[%s3 + $0x40] sm:$0xff]
        %v795 = vld [vmem:[%s3 + $0x48] sm:$0xff]
        %v796 = vld [vmem:[%s3 + $0x50] sm:$0xff]
        %v797 = vld [vmem:[%s3 + $0x58] sm:$0xff]
        %v798 = vld [vmem:[%s3 + $0x60] sm:$0xff]
        %v799 = vld [vmem:[%s3 + $0x68] sm:$0xff]
        %v800 = vld [vmem:[%s3 + $0x70] sm:$0xff]
        %v801 = vld [vmem:[%s3 + $0x78] sm:$0xff]
        %v802 = vld [vmem:[%s3 + $0x80] sm:$0xff]
        %v803 = vld [vmem:[%s3 + $0x88] sm:$0xff]
        %v804 = vld [vmem:[%s3 + $0x90] sm:$0xff]
        %v805 = vld [vmem:[%s3 + $0x98] sm:$0xff]
        %v806 = vld [vmem:[%s3 + $0xa0] sm:$0xff]
        %v807 = vld [vmem:[%s3 + $0xa8] sm:$0xff]
        %v808 = vld [vmem:[%s3 + $0xb0] sm:$0xff]
        %v809 = vld [vmem:[%s3 + $0xb8] sm:$0xff]
        %v810 = vld [vmem:[%s3 + $0xc0] sm:$0xff]
        %v811 = vld [vmem:[%s3 + $0xc8] sm:$0xff]
        %v812 = vld [vmem:[%s3 + $0xd0] sm:$0xff]
        %v813 = vld [vmem:[%s3 + $0xd8] sm:$0xff]
        %v814 = vld [vmem:[%s3 + $0xe0] sm:$0xff]
        %v815 = vld [vmem:[%s3 + $0xe8] sm:$0xff]
        %v816 = vld [vmem:[%s3 + $0xf0] sm:$0xff]
        %v817 = vld [vmem:[%s3 + $0xf8] sm:$0xff]
        %v818 = vld [vmem:[%s3 + $0x100] sm:$0xff]
        %v819 = vld [vmem:[%s3 + $0x108] sm:$0xff]
        %v820 = vld [vmem:[%s3 + $0x110] sm:$0xff]
        %v821 = vld [vmem:[%s3 + $0x118] sm:$0xff]
        %v822 = vld [vmem:[%s3 + $0x120] sm:$0xff]
        %v823 = vld [vmem:[%s3 + $0x128] sm:$0xff]
        %v824 = vld [vmem:[%s3 + $0x130] sm:$0xff]
        %v825 = vld [vmem:[%s3 + $0x138] sm:$0xff]
        %v826 = vld [vmem:[%s3 + $0x140] sm:$0xff]
        %v827 = vld [vmem:[%s3 + $0x148] sm:$0xff]
        %v828 = vld [vmem:[%s3 + $0x150] sm:$0xff]
        %v829 = vld [vmem:[%s3 + $0x158] sm:$0xff]
        %v830 = vld [vmem:[%s3 + $0x160] sm:$0xff]
        %v831 = vld [vmem:[%s3 + $0x168] sm:$0xff]
        %v832 = vld [vmem:[%s3 + $0x170] sm:$0xff]
        %v833 = vld [vmem:[%s3 + $0x178] sm:$0xff]
        %v834 = vld [vmem:[%s3 + $0x180] sm:$0xff]
        %v835 = vld [vmem:[%s3 + $0x188] sm:$0xff]
        %v836 = vld [vmem:[%s3 + $0x190] sm:$0xff]
        %v837 = vld [vmem:[%s3 + $0x198] sm:$0xff]
        %v838 = vld [vmem:[%s3 + $0x1a0] sm:$0xff]
        %v839 = vld [vmem:[%s3 + $0x1a8] sm:$0xff]
        %v840 = vld [vmem:[%s3 + $0x1b0] sm:$0xff]
        %v841 = vld [vmem:[%s3 + $0x1b8] sm:$0xff]
        %v842 = vld [vmem:[%s3 + $0x1c0] sm:$0xff]
        %v843 = vld [vmem:[%s3 + $0x1c8] sm:$0xff]
        %v844 = vld [vmem:[%s3 + $0x1d0] sm:$0xff]
        %v845 = vld [vmem:[%s3 + $0x1d8] sm:$0xff]
        %v846 = vld [vmem:[%s3 + $0x1e0] sm:$0xff]
        %v847 = vld [vmem:[%s3 + $0x1e8] sm:$0xff]
        %v848 = vld [vmem:[%s3 + $0x1f0] sm:$0xff]
        %v849 = vld [vmem:[%s3 + $0x1f8] sm:$0xff]
        %v850 = vld [vmem:[%s4] sm:$0x3]
        %v852 = vlaneseq
        %v853 = vshrl.u32 %v852, 7
        %v854 = vsub.s32 0, %v853
        %v855 = vrot.slane %v850, %v854
        %v856 = vlaneseq
        %v857 = vshrl.u32 %v856, 7
        %v858 = vsub.s32 1, %v857
        %v859 = vrot.slane %v850, %v858
        %862 = vmatprep.subr.mxu0 %v787
        %863 = vmatpush1.msra.mxu0 %v786
        %864 = vmatprep.subr.mxu0 %v789
        %865 = vmatpush1.msra.mxu0 %v788
        %866 = vmatprep.subr.mxu0 %v791
        %867 = vmatpush1.msra.mxu0 %v790
        %868 = vmatprep.subr.mxu0 %v793
        %869 = vmatpush1.msra.mxu0 %v792
        %870 = vmatprep.subr.mxu0 %v795
        %871 = vmatpush1.msra.mxu0 %v794
        %872 = vmatprep.subr.mxu0 %v797
        %873 = vmatpush1.msra.mxu0 %v796
        %874 = vmatprep.subr.mxu0 %v799
        %875 = vmatpush1.msra.mxu0 %v798
        %876 = vmatprep.subr.mxu0 %v801
        %877 = vmatpush1.msra.mxu0 %v800
        %878 = vmatprep.subr.mxu0 %v803
        %879 = vmatpush1.msra.mxu0 %v802
        %880 = vmatprep.subr.mxu0 %v805
        %881 = vmatpush1.msra.mxu0 %v804
        %882 = vmatprep.subr.mxu0 %v807
        %883 = vmatpush1.msra.mxu0 %v806
        %884 = vmatprep.subr.mxu0 %v809
        %885 = vmatpush1.msra.mxu0 %v808
        %886 = vmatprep.subr.mxu0 %v811
        %887 = vmatpush1.msra.mxu0 %v810
        %888 = vmatprep.subr.mxu0 %v813
        %889 = vmatpush1.msra.mxu0 %v812
        %890 = vmatprep.subr.mxu0 %v815
        %891 = vmatpush1.msra.mxu0 %v814
        %892 = vmatprep.subr.mxu0 %v817
        %893 = vmatpush1.msra.mxu0 %v816
        %894 = vmatprep.subr.mxu0 %v819
        %895 = vmatpush1.msra.mxu0 %v818
        %896 = vmatprep.subr.mxu0 %v821
        %897 = vmatpush1.msra.mxu0 %v820
        %898 = vmatprep.subr.mxu0 %v823
        %899 = vmatpush1.msra.mxu0 %v822
        %900 = vmatprep.subr.mxu0 %v825
        %901 = vmatpush1.msra.mxu0 %v824
        %902 = vmatprep.subr.mxu0 %v827
        %903 = vmatpush1.msra.mxu0 %v826
        %904 = vmatprep.subr.mxu0 %v829
        %905 = vmatpush1.msra.mxu0 %v828
        %906 = vmatprep.subr.mxu0 %v831
        %907 = vmatpush1.msra.mxu0 %v830
        %908 = vmatprep.subr.mxu0 %v833
        %909 = vmatpush1.msra.mxu0 %v832
        %910 = vmatprep.subr.mxu0 %v835
        %911 = vmatpush1.msra.mxu0 %v834
        %912 = vmatprep.subr.mxu0 %v837
        %913 = vmatpush1.msra.mxu0 %v836
        %914 = vmatprep.subr.mxu0 %v839
        %915 = vmatpush1.msra.mxu0 %v838
        %916 = vmatprep.subr.mxu0 %v841
        %917 = vmatpush1.msra.mxu0 %v840
        %918 = vmatprep.subr.mxu0 %v843
        %919 = vmatpush1.msra.mxu0 %v842
        %920 = vmatprep.subr.mxu0 %v845
        %921 = vmatpush1.msra.mxu0 %v844
        %922 = vmatprep.subr.mxu0 %v847
        %923 = vmatpush1.msra.mxu0 %v846
        %924 = vmatprep.subr.mxu0 %v849
        %925 = vmatpush1.msra.mxu0 %v848
        %926 = vmatprep.mubr.f32.mxu0 %v755
        %927 = vmatmul.mubr.f32.gmra.mrb[0].mxu0 %v754
        %v928 = vpop.f32.mrb[0].mxu0
        %v929 = vadd.f32 %v855, %v928
        %v930 = vpop.f32.mrb[0].mxu0
        %v931 = vadd.f32 %v859, %v930
        %932 = vmatprep.mubr.f32.mxu0 %v757
        %933 = vmatmul.mubr.f32.gmra.mrb[0].mxu0 %v756
        %v934 = vpop.f32.mrb[0].mxu0
        %v935 = vadd.f32 %v855, %v934
        %v936 = vpop.f32.mrb[0].mxu0
        %v937 = vadd.f32 %v859, %v936
        %938 = vmatprep.mubr.f32.mxu0 %v759
        %939 = vmatmul.mubr.f32.gmra.mrb[0].mxu0 %v758
        %v940 = vpop.f32.mrb[0].mxu0
        %v941 = vadd.f32 %v855, %v940
        %v942 = vpop.f32.mrb[0].mxu0
        %v943 = vadd.f32 %v859, %v942
        %944 = vmatprep.mubr.f32.mxu0 %v761
        %945 = vmatmul.mubr.f32.gmra.mrb[0].mxu0 %v760
        %v946 = vpop.f32.mrb[0].mxu0
        %v947 = vadd.f32 %v855, %v946
        %v948 = vpop.f32.mrb[0].mxu0
        %v949 = vadd.f32 %v859, %v948
        %950 = vmatprep.mubr.f32.mxu0 %v763
        %951 = vmatmul.mubr.f32.gmra.mrb[0].mxu0 %v762
        %v952 = vpop.f32.mrb[0].mxu0
        %v953 = vadd.f32 %v855, %v952
        %v954 = vpop.f32.mrb[0].mxu0
        %v955 = vadd.f32 %v859, %v954
        %956 = vmatprep.mubr.f32.mxu0 %v765
        %957 = vmatmul.mubr.f32.gmra.mrb[0].mxu0 %v764
        %v958 = vpop.f32.mrb[0].mxu0
        %v959 = vadd.f32 %v855, %v958
        %v960 = vpop.f32.mrb[0].mxu0
        %v961 = vadd.f32 %v859, %v960
        %962 = vmatprep.mubr.f32.mxu0 %v767
        %963 = vmatmul.mubr.f32.gmra.mrb[0].mxu0 %v766
        %v964 = vpop.f32.mrb[0].mxu0
        %v965 = vadd.f32 %v855, %v964
        %v966 = vpop.f32.mrb[0].mxu0
        %v967 = vadd.f32 %v859, %v966
        %968 = vmatprep.mubr.f32.mxu0 %v769
        %969 = vmatmul.mubr.f32.gmra.mrb[0].mxu0 %v768
        %v970 = vpop.f32.mrb[0].mxu0
        %v971 = vadd.f32 %v855, %v970
        %v972 = vpop.f32.mrb[0].mxu0
        %v973 = vadd.f32 %v859, %v972
        %974 = vmatprep.mubr.f32.mxu0 %v771
        %975 = vmatmul.mubr.f32.gmra.mrb[0].mxu0 %v770
        %v976 = vpop.f32.mrb[0].mxu0
        %v977 = vadd.f32 %v855, %v976
        %v978 = vpop.f32.mrb[0].mxu0
        %v979 = vadd.f32 %v859, %v978
        %980 = vmatprep.mubr.f32.mxu0 %v773
        %981 = vmatmul.mubr.f32.gmra.mrb[0].mxu0 %v772
        %v982 = vpop.f32.mrb[0].mxu0
        %v983 = vadd.f32 %v855, %v982
        %v984 = vpop.f32.mrb[0].mxu0
        %v985 = vadd.f32 %v859, %v984
        %986 = vmatprep.mubr.f32.mxu0 %v775
        %987 = vmatmul.mubr.f32.gmra.mrb[0].mxu0 %v774
        %v988 = vpop.f32.mrb[0].mxu0
        %v989 = vadd.f32 %v855, %v988
        %v990 = vpop.f32.mrb[0].mxu0
        %v991 = vadd.f32 %v859, %v990
        %992 = vmatprep.mubr.f32.mxu0 %v777
        %993 = vmatmul.mubr.f32.gmra.mrb[0].mxu0 %v776
        %v994 = vpop.f32.mrb[0].mxu0
        %v995 = vadd.f32 %v855, %v994
        %v996 = vpop.f32.mrb[0].mxu0
        %v997 = vadd.f32 %v859, %v996
        %998 = vmatprep.mubr.f32.mxu0 %v779
        %999 = vmatmul.mubr.f32.gmra.mrb[0].mxu0 %v778
        %v1000 = vpop.f32.mrb[0].mxu0
        %v1001 = vadd.f32 %v855, %v1000
        %v1002 = vpop.f32.mrb[0].mxu0
        %v1003 = vadd.f32 %v859, %v1002
        %1004 = vmatprep.mubr.f32.mxu0 %v781
        %1005 = vmatmul.mubr.f32.gmra.mrb[0].mxu0 %v780
        %v1006 = vpop.f32.mrb[0].mxu0
        %v1007 = vadd.f32 %v855, %v1006
        %v1008 = vpop.f32.mrb[0].mxu0
        %v1009 = vadd.f32 %v859, %v1008
        %1010 = vmatprep.mubr.f32.mxu0 %v783
        %1011 = vmatmul.mubr.f32.gmra.mrb[0].mxu0 %v782
        %v1012 = vpop.f32.mrb[0].mxu0
        %v1013 = vadd.f32 %v855, %v1012
        %v1014 = vpop.f32.mrb[0].mxu0
        %v1015 = vadd.f32 %v859, %v1014
        %1016 = vmatprep.mubr.f32.mxu0 %v785
        %1017 = vmatmul.mubr.f32.gmra.mrb[0].mxu0 %v784
        %v1018 = vpop.f32.mrb[0].mxu0
        %v1019 = vadd.f32 %v855, %v1018
        %v1020 = vpop.f32.mrb[0].mxu0
        %v1021 = vadd.f32 %v859, %v1020
        %1022 = vdwg.mxu0
        %v1023 = vmax.f32 %v929, 0.0
        %v1024 = vmax.f32 %v931, 0.0
        %v1025 = vmax.f32 %v935, 0.0
        %v1026 = vmax.f32 %v937, 0.0
        %v1027 = vmax.f32 %v941, 0.0
        %v1028 = vmax.f32 %v943, 0.0
        %v1029 = vmax.f32 %v947, 0.0
        %v1030 = vmax.f32 %v949, 0.0
        %v1031 = vmax.f32 %v953, 0.0
        %v1032 = vmax.f32 %v955, 0.0
        %v1033 = vmax.f32 %v959, 0.0
        %v1034 = vmax.f32 %v961, 0.0
        %v1035 = vmax.f32 %v965, 0.0
        %v1036 = vmax.f32 %v967, 0.0
        %v1037 = vmax.f32 %v971, 0.0
        %v1038 = vmax.f32 %v973, 0.0
        %v1039 = vmax.f32 %v977, 0.0
        %v1040 = vmax.f32 %v979, 0.0
        %v1041 = vmax.f32 %v983, 0.0
        %v1042 = vmax.f32 %v985, 0.0
        %v1043 = vmax.f32 %v989, 0.0
        %v1044 = vmax.f32 %v991, 0.0
        %v1045 = vmax.f32 %v995, 0.0
        %v1046 = vmax.f32 %v997, 0.0
        %v1047 = vmax.f32 %v1001, 0.0
        %v1048 = vmax.f32 %v1003, 0.0
        %v1049 = vmax.f32 %v1007, 0.0
        %v1050 = vmax.f32 %v1009, 0.0
        %v1051 = vmax.f32 %v1013, 0.0
        %v1052 = vmax.f32 %v1015, 0.0
        %v1053 = vmax.f32 %v1019, 0.0
        %v1054 = vmax.f32 %v1021, 0.0
        %v1055 = vld [vmem:[#allocation3] sm:$0xff]
        %v1056 = vld [vmem:[#allocation3 + $0x8] sm:$0xff]
        %v1057 = vld [vmem:[#allocation3 + $0x10] sm:$0xff]
        %v1058 = vld [vmem:[#allocation3 + $0x18] sm:$0xff]
        %v1059 = vld [vmem:[#allocation3 + $0x20] sm:$0xff]
        %v1060 = vld [vmem:[#allocation3 + $0x28] sm:$0xff]
        %v1061 = vld [vmem:[#allocation3 + $0x30] sm:$0xff]
        %v1062 = vld [vmem:[#allocation3 + $0x38] sm:$0xff]
        %v1063 = vld [vmem:[#allocation3 + $0x40] sm:$0xff]
        %v1064 = vld [vmem:[#allocation3 + $0x48] sm:$0xff]
        %v1065 = vld [vmem:[#allocation3 + $0x50] sm:$0xff]
        %v1066 = vld [vmem:[#allocation3 + $0x58] sm:$0xff]
        %v1067 = vld [vmem:[#allocation3 + $0x60] sm:$0xff]
        %v1068 = vld [vmem:[#allocation3 + $0x68] sm:$0xff]
        %v1069 = vld [vmem:[#allocation3 + $0x70] sm:$0xff]
        %v1070 = vld [vmem:[#allocation3 + $0x78] sm:$0xff]
        %v1071 = vld [vmem:[#allocation3 + $0x80] sm:$0xff]
        %v1072 = vld [vmem:[#allocation3 + $0x88] sm:$0xff]
        %v1073 = vld [vmem:[#allocation3 + $0x90] sm:$0xff]
        %v1074 = vld [vmem:[#allocation3 + $0x98] sm:$0xff]
        %v1075 = vld [vmem:[#allocation3 + $0xa0] sm:$0xff]
        %v1076 = vld [vmem:[#allocation3 + $0xa8] sm:$0xff]
        %v1077 = vld [vmem:[#allocation3 + $0xb0] sm:$0xff]
        %v1078 = vld [vmem:[#allocation3 + $0xb8] sm:$0xff]
        %v1079 = vld [vmem:[#allocation3 + $0xc0] sm:$0xff]
        %v1080 = vld [vmem:[#allocation3 + $0xc8] sm:$0xff]
        %v1081 = vld [vmem:[#allocation3 + $0xd0] sm:$0xff]
        %v1082 = vld [vmem:[#allocation3 + $0xd8] sm:$0xff]
        %v1083 = vld [vmem:[#allocation3 + $0xe0] sm:$0xff]
        %v1084 = vld [vmem:[#allocation3 + $0xe8] sm:$0xff]
        %v1085 = vld [vmem:[#allocation3 + $0xf0] sm:$0xff]
        %v1086 = vld [vmem:[#allocation3 + $0xf8] sm:$0xff]
        %v1087 = vld [vmem:[#allocation3 + $0x100] sm:$0xff]
        %v1088 = vld [vmem:[#allocation3 + $0x108] sm:$0xff]
        %v1089 = vld [vmem:[#allocation3 + $0x110] sm:$0xff]
        %v1090 = vld [vmem:[#allocation3 + $0x118] sm:$0xff]
        %v1091 = vld [vmem:[#allocation3 + $0x120] sm:$0xff]
        %v1092 = vld [vmem:[#allocation3 + $0x128] sm:$0xff]
        %v1093 = vld [vmem:[#allocation3 + $0x130] sm:$0xff]
        %v1094 = vld [vmem:[#allocation3 + $0x138] sm:$0xff]
        %v1095 = vld [vmem:[#allocation3 + $0x140] sm:$0xff]
        %v1096 = vld [vmem:[#allocation3 + $0x148] sm:$0xff]
        %v1097 = vld [vmem:[#allocation3 + $0x150] sm:$0xff]
        %v1098 = vld [vmem:[#allocation3 + $0x158] sm:$0xff]
        %v1099 = vld [vmem:[#allocation3 + $0x160] sm:$0xff]
        %v1100 = vld [vmem:[#allocation3 + $0x168] sm:$0xff]
        %v1101 = vld [vmem:[#allocation3 + $0x170] sm:$0xff]
        %v1102 = vld [vmem:[#allocation3 + $0x178] sm:$0xff]
        %v1103 = vld [vmem:[#allocation3 + $0x180] sm:$0xff]
        %v1104 = vld [vmem:[#allocation3 + $0x188] sm:$0xff]
        %v1105 = vld [vmem:[#allocation3 + $0x190] sm:$0xff]
        %v1106 = vld [vmem:[#allocation3 + $0x198] sm:$0xff]
        %v1107 = vld [vmem:[#allocation3 + $0x1a0] sm:$0xff]
        %v1108 = vld [vmem:[#allocation3 + $0x1a8] sm:$0xff]
        %v1109 = vld [vmem:[#allocation3 + $0x1b0] sm:$0xff]
        %v1110 = vld [vmem:[#allocation3 + $0x1b8] sm:$0xff]
        %v1111 = vld [vmem:[#allocation3 + $0x1c0] sm:$0xff]
        %v1112 = vld [vmem:[#allocation3 + $0x1c8] sm:$0xff]
        %v1113 = vld [vmem:[#allocation3 + $0x1d0] sm:$0xff]
        %v1114 = vld [vmem:[#allocation3 + $0x1d8] sm:$0xff]
        %v1115 = vld [vmem:[#allocation3 + $0x1e0] sm:$0xff]
        %v1116 = vld [vmem:[#allocation3 + $0x1e8] sm:$0xff]
        %v1117 = vld [vmem:[#allocation3 + $0x1f0] sm:$0xff]
        %v1118 = vld [vmem:[#allocation3 + $0x1f8] sm:$0xff]
        %v1119 = vld [vmem:[%s6] sm:$0x3]
        %v1121 = vlaneseq
        %v1122 = vshrl.u32 %v1121, 7
        %v1123 = vsub.s32 0, %v1122
        %v1124 = vrot.slane %v1119, %v1123
        %v1125 = vlaneseq
        %v1126 = vshrl.u32 %v1125, 7
        %v1127 = vsub.s32 1, %v1126
        %v1128 = vrot.slane %v1119, %v1127
        %1131 = vmatprep.subr.mxu0 %v1056
        %1132 = vmatpush1.msra.mxu0 %v1055
        %1133 = vmatprep.subr.mxu0 %v1058
        %1134 = vmatpush1.msra.mxu0 %v1057
        %1135 = vmatprep.subr.mxu0 %v1060
        %1136 = vmatpush1.msra.mxu0 %v1059
        %1137 = vmatprep.subr.mxu0 %v1062
        %1138 = vmatpush1.msra.mxu0 %v1061
        %1139 = vmatprep.subr.mxu0 %v1064
        %1140 = vmatpush1.msra.mxu0 %v1063
        %1141 = vmatprep.subr.mxu0 %v1066
        %1142 = vmatpush1.msra.mxu0 %v1065
        %1143 = vmatprep.subr.mxu0 %v1068
        %1144 = vmatpush1.msra.mxu0 %v1067
        %1145 = vmatprep.subr.mxu0 %v1070
        %1146 = vmatpush1.msra.mxu0 %v1069
        %1147 = vmatprep.subr.mxu0 %v1072
        %1148 = vmatpush1.msra.mxu0 %v1071
        %1149 = vmatprep.subr.mxu0 %v1074
        %1150 = vmatpush1.msra.mxu0 %v1073
        %1151 = vmatprep.subr.mxu0 %v1076
        %1152 = vmatpush1.msra.mxu0 %v1075
        %1153 = vmatprep.subr.mxu0 %v1078
        %1154 = vmatpush1.msra.mxu0 %v1077
        %1155 = vmatprep.subr.mxu0 %v1080
        %1156 = vmatpush1.msra.mxu0 %v1079
        %1157 = vmatprep.subr.mxu0 %v1082
        %1158 = vmatpush1.msra.mxu0 %v1081
        %1159 = vmatprep.subr.mxu0 %v1084
        %1160 = vmatpush1.msra.mxu0 %v1083
        %1161 = vmatprep.subr.mxu0 %v1086
        %1162 = vmatpush1.msra.mxu0 %v1085
        %1163 = vmatprep.subr.mxu0 %v1088
        %1164 = vmatpush1.msra.mxu0 %v1087
        %1165 = vmatprep.subr.mxu0 %v1090
        %1166 = vmatpush1.msra.mxu0 %v1089
        %1167 = vmatprep.subr.mxu0 %v1092
        %1168 = vmatpush1.msra.mxu0 %v1091
        %1169 = vmatprep.subr.mxu0 %v1094
        %1170 = vmatpush1.msra.mxu0 %v1093
        %1171 = vmatprep.subr.mxu0 %v1096
        %1172 = vmatpush1.msra.mxu0 %v1095
        %1173 = vmatprep.subr.mxu0 %v1098
        %1174 = vmatpush1.msra.mxu0 %v1097
        %1175 = vmatprep.subr.mxu0 %v1100
        %1176 = vmatpush1.msra.mxu0 %v1099
        %1177 = vmatprep.subr.mxu0 %v1102
        %1178 = vmatpush1.msra.mxu0 %v1101
        %1179 = vmatprep.subr.mxu0 %v1104
        %1180 = vmatpush1.msra.mxu0 %v1103
        %1181 = vmatprep.subr.mxu0 %v1106
        %1182 = vmatpush1.msra.mxu0 %v1105
        %1183 = vmatprep.subr.mxu0 %v1108
        %1184 = vmatpush1.msra.mxu0 %v1107
        %1185 = vmatprep.subr.mxu0 %v1110
        %1186 = vmatpush1.msra.mxu0 %v1109
        %1187 = vmatprep.subr.mxu0 %v1112
        %1188 = vmatpush1.msra.mxu0 %v1111
        %1189 = vmatprep.subr.mxu0 %v1114
        %1190 = vmatpush1.msra.mxu0 %v1113
        %1191 = vmatprep.subr.mxu0 %v1116
        %1192 = vmatpush1.msra.mxu0 %v1115
        %1193 = vmatprep.subr.mxu0 %v1118
        %1194 = vmatpush1.msra.mxu0 %v1117
        %1195 = vmatprep.mubr.f32.mxu0 %v1024
        %1196 = vmatmul.mubr.f32.gmra.mrb[0].mxu0 %v1023
        %v1197 = vpop.f32.mrb[0].mxu0
        %v1198 = vadd.f32 %v1124, %v1197
        %v1199 = vpop.f32.mrb[0].mxu0
        %v1200 = vadd.f32 %v1128, %v1199
        %1201 = vmatprep.mubr.f32.mxu0 %v1026
        %1202 = vmatmul.mubr.f32.gmra.mrb[0].mxu0 %v1025
        %v1203 = vpop.f32.mrb[0].mxu0
        %v1204 = vadd.f32 %v1124, %v1203
        %v1205 = vpop.f32.mrb[0].mxu0
        %v1206 = vadd.f32 %v1128, %v1205
        %1207 = vmatprep.mubr.f32.mxu0 %v1028
        %1208 = vmatmul.mubr.f32.gmra.mrb[0].mxu0 %v1027
        %v1209 = vpop.f32.mrb[0].mxu0
        %v1210 = vadd.f32 %v1124, %v1209
        %v1211 = vpop.f32.mrb[0].mxu0
        %v1212 = vadd.f32 %v1128, %v1211
        %1213 = vmatprep.mubr.f32.mxu0 %v1030
        %1214 = vmatmul.mubr.f32.gmra.mrb[0].mxu0 %v1029
        %v1215 = vpop.f32.mrb[0].mxu0
        %v1216 = vadd.f32 %v1124, %v1215
        %v1217 = vpop.f32.mrb[0].mxu0
        %v1218 = vadd.f32 %v1128, %v1217
        %1219 = vmatprep.mubr.f32.mxu0 %v1032
        %1220 = vmatmul.mubr.f32.gmra.mrb[0].mxu0 %v1031
        %v1221 = vpop.f32.mrb[0].mxu0
        %v1222 = vadd.f32 %v1124, %v1221
        %v1223 = vpop.f32.mrb[0].mxu0
        %v1224 = vadd.f32 %v1128, %v1223
        %1225 = vmatprep.mubr.f32.mxu0 %v1034
        %1226 = vmatmul.mubr.f32.gmra.mrb[0].mxu0 %v1033
        %v1227 = vpop.f32.mrb[0].mxu0
        %v1228 = vadd.f32 %v1124, %v1227
        %v1229 = vpop.f32.mrb[0].mxu0
        %v1230 = vadd.f32 %v1128, %v1229
        %1231 = vmatprep.mubr.f32.mxu0 %v1036
        %1232 = vmatmul.mubr.f32.gmra.mrb[0].mxu0 %v1035
        %v1233 = vpop.f32.mrb[0].mxu0
        %v1234 = vadd.f32 %v1124, %v1233
        %v1235 = vpop.f32.mrb[0].mxu0
        %v1236 = vadd.f32 %v1128, %v1235
        %1237 = vmatprep.mubr.f32.mxu0 %v1038
        %1238 = vmatmul.mubr.f32.gmra.mrb[0].mxu0 %v1037
        %v1239 = vpop.f32.mrb[0].mxu0
        %v1240 = vadd.f32 %v1124, %v1239
        %v1241 = vpop.f32.mrb[0].mxu0
        %v1242 = vadd.f32 %v1128, %v1241
        %1243 = vmatprep.mubr.f32.mxu0 %v1040
        %1244 = vmatmul.mubr.f32.gmra.mrb[0].mxu0 %v1039
        %v1245 = vpop.f32.mrb[0].mxu0
        %v1246 = vadd.f32 %v1124, %v1245
        %v1247 = vpop.f32.mrb[0].mxu0
        %v1248 = vadd.f32 %v1128, %v1247
        %1249 = vmatprep.mubr.f32.mxu0 %v1042
        %1250 = vmatmul.mubr.f32.gmra.mrb[0].mxu0 %v1041
        %v1251 = vpop.f32.mrb[0].mxu0
        %v1252 = vadd.f32 %v1124, %v1251
        %v1253 = vpop.f32.mrb[0].mxu0
        %v1254 = vadd.f32 %v1128, %v1253
        %1255 = vmatprep.mubr.f32.mxu0 %v1044
        %1256 = vmatmul.mubr.f32.gmra.mrb[0].mxu0 %v1043
        %v1257 = vpop.f32.mrb[0].mxu0
        %v1258 = vadd.f32 %v1124, %v1257
        %v1259 = vpop.f32.mrb[0].mxu0
        %v1260 = vadd.f32 %v1128, %v1259
        %1261 = vmatprep.mubr.f32.mxu0 %v1046
        %1262 = vmatmul.mubr.f32.gmra.mrb[0].mxu0 %v1045
        %v1263 = vpop.f32.mrb[0].mxu0
        %v1264 = vadd.f32 %v1124, %v1263
        %v1265 = vpop.f32.mrb[0].mxu0
        %v1266 = vadd.f32 %v1128, %v1265
        %1267 = vmatprep.mubr.f32.mxu0 %v1048
        %1268 = vmatmul.mubr.f32.gmra.mrb[0].mxu0 %v1047
        %v1269 = vpop.f32.mrb[0].mxu0
        %v1270 = vadd.f32 %v1124, %v1269
        %v1271 = vpop.f32.mrb[0].mxu0
        %v1272 = vadd.f32 %v1128, %v1271
        %1273 = vmatprep.mubr.f32.mxu0 %v1050
        %1274 = vmatmul.mubr.f32.gmra.mrb[0].mxu0 %v1049
        %v1275 = vpop.f32.mrb[0].mxu0
        %v1276 = vadd.f32 %v1124, %v1275
        %v1277 = vpop.f32.mrb[0].mxu0
        %v1278 = vadd.f32 %v1128, %v1277
        %1279 = vmatprep.mubr.f32.mxu0 %v1052
        %1280 = vmatmul.mubr.f32.gmra.mrb[0].mxu0 %v1051
        %v1281 = vpop.f32.mrb[0].mxu0
        %v1282 = vadd.f32 %v1124, %v1281
        %v1283 = vpop.f32.mrb[0].mxu0
        %v1284 = vadd.f32 %v1128, %v1283
        %1285 = vmatprep.mubr.f32.mxu0 %v1054
        %1286 = vmatmul.mubr.f32.gmra.mrb[0].mxu0 %v1053
        %v1287 = vpop.f32.mrb[0].mxu0
        %v1288 = vadd.f32 %v1124, %v1287
        %v1289 = vpop.f32.mrb[0].mxu0
        %v1290 = vadd.f32 %v1128, %v1289
        %1291 = vdwg.mxu0
        %v1292 = vmax.f32 %v1198, 0.0
        %v1293 = vmax.f32 %v1200, 0.0
        %v1294 = vmax.f32 %v1204, 0.0
        %v1295 = vmax.f32 %v1206, 0.0
        %v1296 = vmax.f32 %v1210, 0.0
        %v1297 = vmax.f32 %v1212, 0.0
        %v1298 = vmax.f32 %v1216, 0.0
        %v1299 = vmax.f32 %v1218, 0.0
        %v1300 = vmax.f32 %v1222, 0.0
        %v1301 = vmax.f32 %v1224, 0.0
        %v1302 = vmax.f32 %v1228, 0.0
        %v1303 = vmax.f32 %v1230, 0.0
        %v1304 = vmax.f32 %v1234, 0.0
        %v1305 = vmax.f32 %v1236, 0.0
        %v1306 = vmax.f32 %v1240, 0.0
        %v1307 = vmax.f32 %v1242, 0.0
        %v1308 = vmax.f32 %v1246, 0.0
        %v1309 = vmax.f32 %v1248, 0.0
        %v1310 = vmax.f32 %v1252, 0.0
        %v1311 = vmax.f32 %v1254, 0.0
        %v1312 = vmax.f32 %v1258, 0.0
        %v1313 = vmax.f32 %v1260, 0.0
        %v1314 = vmax.f32 %v1264, 0.0
        %v1315 = vmax.f32 %v1266, 0.0
        %v1316 = vmax.f32 %v1270, 0.0
        %v1317 = vmax.f32 %v1272, 0.0
        %v1318 = vmax.f32 %v1276, 0.0
        %v1319 = vmax.f32 %v1278, 0.0
        %v1320 = vmax.f32 %v1282, 0.0
        %v1321 = vmax.f32 %v1284, 0.0
        %v1322 = vmax.f32 %v1288, 0.0
        %v1323 = vmax.f32 %v1290, 0.0
        %v1324 = vld [vmem:[#allocation5] sm:$0xff]
        %v1325 = vld [vmem:[#allocation5 + $0x8] sm:$0xff]
        %v1326 = vld [vmem:[#allocation5 + $0x10] sm:$0xff]
        %v1327 = vld [vmem:[#allocation5 + $0x18] sm:$0xff]
        %v1328 = vld [vmem:[#allocation5 + $0x20] sm:$0xff]
        %v1329 = vld [vmem:[#allocation5 + $0x28] sm:$0xff]
        %v1330 = vld [vmem:[#allocation5 + $0x30] sm:$0xff]
        %v1331 = vld [vmem:[#allocation5 + $0x38] sm:$0xff]
        %v1332 = vld [vmem:[#allocation5 + $0x40] sm:$0xff]
        %v1333 = vld [vmem:[#allocation5 + $0x48] sm:$0xff]
        %v1334 = vld [vmem:[#allocation5 + $0x50] sm:$0xff]
        %v1335 = vld [vmem:[#allocation5 + $0x58] sm:$0xff]
        %v1336 = vld [vmem:[#allocation5 + $0x60] sm:$0xff]
        %v1337 = vld [vmem:[#allocation5 + $0x68] sm:$0xff]
        %v1338 = vld [vmem:[#allocation5 + $0x70] sm:$0xff]
        %v1339 = vld [vmem:[#allocation5 + $0x78] sm:$0xff]
        %v1340 = vld [vmem:[#allocation5 + $0x80] sm:$0xff]
        %v1341 = vld [vmem:[#allocation5 + $0x88] sm:$0xff]
        %v1342 = vld [vmem:[#allocation5 + $0x90] sm:$0xff]
        %v1343 = vld [vmem:[#allocation5 + $0x98] sm:$0xff]
        %v1344 = vld [vmem:[#allocation5 + $0xa0] sm:$0xff]
        %v1345 = vld [vmem:[#allocation5 + $0xa8] sm:$0xff]
        %v1346 = vld [vmem:[#allocation5 + $0xb0] sm:$0xff]
        %v1347 = vld [vmem:[#allocation5 + $0xb8] sm:$0xff]
        %v1348 = vld [vmem:[#allocation5 + $0xc0] sm:$0xff]
        %v1349 = vld [vmem:[#allocation5 + $0xc8] sm:$0xff]
        %v1350 = vld [vmem:[#allocation5 + $0xd0] sm:$0xff]
        %v1351 = vld [vmem:[#allocation5 + $0xd8] sm:$0xff]
        %v1352 = vld [vmem:[#allocation5 + $0xe0] sm:$0xff]
        %v1353 = vld [vmem:[#allocation5 + $0xe8] sm:$0xff]
        %v1354 = vld [vmem:[#allocation5 + $0xf0] sm:$0xff]
        %v1355 = vld [vmem:[#allocation5 + $0xf8] sm:$0xff]
        %v1356 = vld [vmem:[#allocation5 + $0x100] sm:$0xff]
        %v1357 = vld [vmem:[#allocation5 + $0x108] sm:$0xff]
        %v1358 = vld [vmem:[#allocation5 + $0x110] sm:$0xff]
        %v1359 = vld [vmem:[#allocation5 + $0x118] sm:$0xff]
        %v1360 = vld [vmem:[#allocation5 + $0x120] sm:$0xff]
        %v1361 = vld [vmem:[#allocation5 + $0x128] sm:$0xff]
        %v1362 = vld [vmem:[#allocation5 + $0x130] sm:$0xff]
        %v1363 = vld [vmem:[#allocation5 + $0x138] sm:$0xff]
        %v1364 = vld [vmem:[#allocation5 + $0x140] sm:$0xff]
        %v1365 = vld [vmem:[#allocation5 + $0x148] sm:$0xff]
        %v1366 = vld [vmem:[#allocation5 + $0x150] sm:$0xff]
        %v1367 = vld [vmem:[#allocation5 + $0x158] sm:$0xff]
        %v1368 = vld [vmem:[#allocation5 + $0x160] sm:$0xff]
        %v1369 = vld [vmem:[#allocation5 + $0x168] sm:$0xff]
        %v1370 = vld [vmem:[#allocation5 + $0x170] sm:$0xff]
        %v1371 = vld [vmem:[#allocation5 + $0x178] sm:$0xff]
        %v1372 = vld [vmem:[#allocation5 + $0x180] sm:$0xff]
        %v1373 = vld [vmem:[#allocation5 + $0x188] sm:$0xff]
        %v1374 = vld [vmem:[#allocation5 + $0x190] sm:$0xff]
        %v1375 = vld [vmem:[#allocation5 + $0x198] sm:$0xff]
        %v1376 = vld [vmem:[#allocation5 + $0x1a0] sm:$0xff]
        %v1377 = vld [vmem:[#allocation5 + $0x1a8] sm:$0xff]
        %v1378 = vld [vmem:[#allocation5 + $0x1b0] sm:$0xff]
        %v1379 = vld [vmem:[#allocation5 + $0x1b8] sm:$0xff]
        %v1380 = vld [vmem:[#allocation5 + $0x1c0] sm:$0xff]
        %v1381 = vld [vmem:[#allocation5 + $0x1c8] sm:$0xff]
        %v1382 = vld [vmem:[#allocation5 + $0x1d0] sm:$0xff]
        %v1383 = vld [vmem:[#allocation5 + $0x1d8] sm:$0xff]
        %v1384 = vld [vmem:[#allocation5 + $0x1e0] sm:$0xff]
        %v1385 = vld [vmem:[#allocation5 + $0x1e8] sm:$0xff]
        %v1386 = vld [vmem:[#allocation5 + $0x1f0] sm:$0xff]
        %v1387 = vld [vmem:[#allocation5 + $0x1f8] sm:$0xff]
        %v1388 = vld [vmem:[%s8] sm:$0x3]
        %v1390 = vlaneseq
        %v1391 = vshrl.u32 %v1390, 7
        %v1392 = vsub.s32 0, %v1391
        %v1393 = vrot.slane %v1388, %v1392
        %v1394 = vlaneseq
        %v1395 = vshrl.u32 %v1394, 7
        %v1396 = vsub.s32 1, %v1395
        %v1397 = vrot.slane %v1388, %v1396
        %1400 = vmatprep.subr.mxu0 %v1325
        %1401 = vmatpush1.msra.mxu0 %v1324
        %1402 = vmatprep.subr.mxu0 %v1327
        %1403 = vmatpush1.msra.mxu0 %v1326
        %1404 = vmatprep.subr.mxu0 %v1329
        %1405 = vmatpush1.msra.mxu0 %v1328
        %1406 = vmatprep.subr.mxu0 %v1331
        %1407 = vmatpush1.msra.mxu0 %v1330
        %1408 = vmatprep.subr.mxu0 %v1333
        %1409 = vmatpush1.msra.mxu0 %v1332
        %1410 = vmatprep.subr.mxu0 %v1335
        %1411 = vmatpush1.msra.mxu0 %v1334
        %1412 = vmatprep.subr.mxu0 %v1337
        %1413 = vmatpush1.msra.mxu0 %v1336
        %1414 = vmatprep.subr.mxu0 %v1339
        %1415 = vmatpush1.msra.mxu0 %v1338
        %1416 = vmatprep.subr.mxu0 %v1341
        %1417 = vmatpush1.msra.mxu0 %v1340
        %1418 = vmatprep.subr.mxu0 %v1343
        %1419 = vmatpush1.msra.mxu0 %v1342
        %1420 = vmatprep.subr.mxu0 %v1345
        %1421 = vmatpush1.msra.mxu0 %v1344
        %1422 = vmatprep.subr.mxu0 %v1347
        %1423 = vmatpush1.msra.mxu0 %v1346
        %1424 = vmatprep.subr.mxu0 %v1349
        %1425 = vmatpush1.msra.mxu0 %v1348
        %1426 = vmatprep.subr.mxu0 %v1351
        %1427 = vmatpush1.msra.mxu0 %v1350
        %1428 = vmatprep.subr.mxu0 %v1353
        %1429 = vmatpush1.msra.mxu0 %v1352
        %1430 = vmatprep.subr.mxu0 %v1355
        %1431 = vmatpush1.msra.mxu0 %v1354
        %1432 = vmatprep.subr.mxu0 %v1357
        %1433 = vmatpush1.msra.mxu0 %v1356
        %1434 = vmatprep.subr.mxu0 %v1359
        %1435 = vmatpush1.msra.mxu0 %v1358
        %1436 = vmatprep.subr.mxu0 %v1361
        %1437 = vmatpush1.msra.mxu0 %v1360
        %1438 = vmatprep.subr.mxu0 %v1363
        %1439 = vmatpush1.msra.mxu0 %v1362
        %1440 = vmatprep.subr.mxu0 %v1365
        %1441 = vmatpush1.msra.mxu0 %v1364
        %1442 = vmatprep.subr.mxu0 %v1367
        %1443 = vmatpush1.msra.mxu0 %v1366
        %1444 = vmatprep.subr.mxu0 %v1369
        %1445 = vmatpush1.msra.mxu0 %v1368
        %1446 = vmatprep.subr.mxu0 %v1371
        %1447 = vmatpush1.msra.mxu0 %v1370
        %1448 = vmatprep.subr.mxu0 %v1373
        %1449 = vmatpush1.msra.mxu0 %v1372
        %1450 = vmatprep.subr.mxu0 %v1375
        %1451 = vmatpush1.msra.mxu0 %v1374
        %1452 = vmatprep.subr.mxu0 %v1377
        %1453 = vmatpush1.msra.mxu0 %v1376
        %1454 = vmatprep.subr.mxu0 %v1379
        %1455 = vmatpush1.msra.mxu0 %v1378
        %1456 = vmatprep.subr.mxu0 %v1381
        %1457 = vmatpush1.msra.mxu0 %v1380
        %1458 = vmatprep.subr.mxu0 %v1383
        %1459 = vmatpush1.msra.mxu0 %v1382
        %1460 = vmatprep.subr.mxu0 %v1385
        %1461 = vmatpush1.msra.mxu0 %v1384
        %1462 = vmatprep.subr.mxu0 %v1387
        %1463 = vmatpush1.msra.mxu0 %v1386
        %1464 = vmatprep.mubr.f32.mxu0 %v1293
        %1465 = vmatmul.mubr.f32.gmra.mrb[0].mxu0 %v1292
        %v1466 = vpop.f32.mrb[0].mxu0
        %v1467 = vadd.f32 %v1393, %v1466
        %v1468 = vpop.f32.mrb[0].mxu0
        %v1469 = vadd.f32 %v1397, %v1468
        %1470 = vmatprep.mubr.f32.mxu0 %v1295
        %1471 = vmatmul.mubr.f32.gmra.mrb[0].mxu0 %v1294
        %v1472 = vpop.f32.mrb[0].mxu0
        %v1473 = vadd.f32 %v1393, %v1472
        %v1474 = vpop.f32.mrb[0].mxu0
        %v1475 = vadd.f32 %v1397, %v1474
        %1476 = vmatprep.mubr.f32.mxu0 %v1297
        %1477 = vmatmul.mubr.f32.gmra.mrb[0].mxu0 %v1296
        %v1478 = vpop.f32.mrb[0].mxu0
        %v1479 = vadd.f32 %v1393, %v1478
        %v1480 = vpop.f32.mrb[0].mxu0
        %v1481 = vadd.f32 %v1397, %v1480
        %1482 = vmatprep.mubr.f32.mxu0 %v1299
        %1483 = vmatmul.mubr.f32.gmra.mrb[0].mxu0 %v1298
        %v1484 = vpop.f32.mrb[0].mxu0
        %v1485 = vadd.f32 %v1393, %v1484
        %v1486 = vpop.f32.mrb[0].mxu0
        %v1487 = vadd.f32 %v1397, %v1486
        %1488 = vmatprep.mubr.f32.mxu0 %v1301
        %1489 = vmatmul.mubr.f32.gmra.mrb[0].mxu0 %v1300
        %v1490 = vpop.f32.mrb[0].mxu0
        %v1491 = vadd.f32 %v1393, %v1490
        %v1492 = vpop.f32.mrb[0].mxu0
        %v1493 = vadd.f32 %v1397, %v1492
        %1494 = vmatprep.mubr.f32.mxu0 %v1303
        %1495 = vmatmul.mubr.f32.gmra.mrb[0].mxu0 %v1302
        %v1496 = vpop.f32.mrb[0].mxu0
        %v1497 = vadd.f32 %v1393, %v1496
        %v1498 = vpop.f32.mrb[0].mxu0
        %v1499 = vadd.f32 %v1397, %v1498
        %1500 = vmatprep.mubr.f32.mxu0 %v1305
        %1501 = vmatmul.mubr.f32.gmra.mrb[0].mxu0 %v1304
        %v1502 = vpop.f32.mrb[0].mxu0
        %v1503 = vadd.f32 %v1393, %v1502
        %v1504 = vpop.f32.mrb[0].mxu0
        %v1505 = vadd.f32 %v1397, %v1504
        %1506 = vmatprep.mubr.f32.mxu0 %v1307
        %1507 = vmatmul.mubr.f32.gmra.mrb[0].mxu0 %v1306
        %v1508 = vpop.f32.mrb[0].mxu0
        %v1509 = vadd.f32 %v1393, %v1508
        %v1510 = vpop.f32.mrb[0].mxu0
        %v1511 = vadd.f32 %v1397, %v1510
        %1512 = vmatprep.mubr.f32.mxu0 %v1309
        %1513 = vmatmul.mubr.f32.gmra.mrb[0].mxu0 %v1308
        %v1514 = vpop.f32.mrb[0].mxu0
        %v1515 = vadd.f32 %v1393, %v1514
        %v1516 = vpop.f32.mrb[0].mxu0
        %v1517 = vadd.f32 %v1397, %v1516
        %1518 = vmatprep.mubr.f32.mxu0 %v1311
        %1519 = vmatmul.mubr.f32.gmra.mrb[0].mxu0 %v1310
        %v1520 = vpop.f32.mrb[0].mxu0
        %v1521 = vadd.f32 %v1393, %v1520
        %v1522 = vpop.f32.mrb[0].mxu0
        %v1523 = vadd.f32 %v1397, %v1522
        %1524 = vmatprep.mubr.f32.mxu0 %v1313
        %1525 = vmatmul.mubr.f32.gmra.mrb[0].mxu0 %v1312
        %v1526 = vpop.f32.mrb[0].mxu0
        %v1527 = vadd.f32 %v1393, %v1526
        %v1528 = vpop.f32.mrb[0].mxu0
        %v1529 = vadd.f32 %v1397, %v1528
        %1530 = vmatprep.mubr.f32.mxu0 %v1315
        %1531 = vmatmul.mubr.f32.gmra.mrb[0].mxu0 %v1314
        %v1532 = vpop.f32.mrb[0].mxu0
        %v1533 = vadd.f32 %v1393, %v1532
        %v1534 = vpop.f32.mrb[0].mxu0
        %v1535 = vadd.f32 %v1397, %v1534
        %1536 = vmatprep.mubr.f32.mxu0 %v1317
        %1537 = vmatmul.mubr.f32.gmra.mrb[0].mxu0 %v1316
        %v1538 = vpop.f32.mrb[0].mxu0
        %v1539 = vadd.f32 %v1393, %v1538
        %v1540 = vpop.f32.mrb[0].mxu0
        %v1541 = vadd.f32 %v1397, %v1540
        %1542 = vmatprep.mubr.f32.mxu0 %v1319
        %1543 = vmatmul.mubr.f32.gmra.mrb[0].mxu0 %v1318
        %v1544 = vpop.f32.mrb[0].mxu0
        %v1545 = vadd.f32 %v1393, %v1544
        %v1546 = vpop.f32.mrb[0].mxu0
        %v1547 = vadd.f32 %v1397, %v1546
        %1548 = vmatprep.mubr.f32.mxu0 %v1321
        %1549 = vmatmul.mubr.f32.gmra.mrb[0].mxu0 %v1320
        %v1550 = vpop.f32.mrb[0].mxu0
        %v1551 = vadd.f32 %v1393, %v1550
        %v1552 = vpop.f32.mrb[0].mxu0
        %v1553 = vadd.f32 %v1397, %v1552
        %1554 = vmatprep.mubr.f32.mxu0 %v1323
        %1555 = vmatmul.mubr.f32.gmra.mrb[0].mxu0 %v1322
        %v1556 = vpop.f32.mrb[0].mxu0
        %v1557 = vadd.f32 %v1393, %v1556
        %v1558 = vpop.f32.mrb[0].mxu0
        %v1559 = vadd.f32 %v1397, %v1558
        %1560 = vdwg.mxu0
        %v1561 = vmax.f32 %v1467, 0.0
        %v1562 = vmax.f32 %v1469, 0.0
        %v1563 = vmax.f32 %v1473, 0.0
        %v1564 = vmax.f32 %v1475, 0.0
        %v1565 = vmax.f32 %v1479, 0.0
        %v1566 = vmax.f32 %v1481, 0.0
        %v1567 = vmax.f32 %v1485, 0.0
        %v1568 = vmax.f32 %v1487, 0.0
        %v1569 = vmax.f32 %v1491, 0.0
        %v1570 = vmax.f32 %v1493, 0.0
        %v1571 = vmax.f32 %v1497, 0.0
        %v1572 = vmax.f32 %v1499, 0.0
        %v1573 = vmax.f32 %v1503, 0.0
        %v1574 = vmax.f32 %v1505, 0.0
        %v1575 = vmax.f32 %v1509, 0.0
        %v1576 = vmax.f32 %v1511, 0.0
        %v1577 = vmax.f32 %v1515, 0.0
        %v1578 = vmax.f32 %v1517, 0.0
        %v1579 = vmax.f32 %v1521, 0.0
        %v1580 = vmax.f32 %v1523, 0.0
        %v1581 = vmax.f32 %v1527, 0.0
        %v1582 = vmax.f32 %v1529, 0.0
        %v1583 = vmax.f32 %v1533, 0.0
        %v1584 = vmax.f32 %v1535, 0.0
        %v1585 = vmax.f32 %v1539, 0.0
        %v1586 = vmax.f32 %v1541, 0.0
        %v1587 = vmax.f32 %v1545, 0.0
        %v1588 = vmax.f32 %v1547, 0.0
        %v1589 = vmax.f32 %v1551, 0.0
        %v1590 = vmax.f32 %v1553, 0.0
        %v1591 = vmax.f32 %v1557, 0.0
        %v1592 = vmax.f32 %v1559, 0.0
        %v1593 = vld [vmem:[%s9] sm:$0x3]
        %v1595 = vlaneseq
        %v1596 = vshrl.u32 %v1595, 7
        %v1597 = vsub.s32 0, %v1596
        %v1598 = vrot.slane %v1593, %v1597
        %v1599 = vlaneseq
        %v1600 = vshrl.u32 %v1599, 7
        %v1601 = vsub.s32 1, %v1600
        %v1602 = vrot.slane %v1593, %v1601
        %v1605 = vmul.f32 %v1561, %v1598
        %v1606 = vmul.f32 %v1562, %v1602
        %v1607 = vmul.f32 %v1563, %v1598
        %v1608 = vmul.f32 %v1564, %v1602
        %v1609 = vmul.f32 %v1565, %v1598
        %v1610 = vmul.f32 %v1566, %v1602
        %v1611 = vmul.f32 %v1567, %v1598
        %v1612 = vmul.f32 %v1568, %v1602
        %v1613 = vmul.f32 %v1569, %v1598
        %v1614 = vmul.f32 %v1570, %v1602
        %v1615 = vmul.f32 %v1571, %v1598
        %v1616 = vmul.f32 %v1572, %v1602
        %v1617 = vmul.f32 %v1573, %v1598
        %v1618 = vmul.f32 %v1574, %v1602
        %v1619 = vmul.f32 %v1575, %v1598
        %v1620 = vmul.f32 %v1576, %v1602
        %v1621 = vmul.f32 %v1577, %v1598
        %v1622 = vmul.f32 %v1578, %v1602
        %v1623 = vmul.f32 %v1579, %v1598
        %v1624 = vmul.f32 %v1580, %v1602
        %v1625 = vmul.f32 %v1581, %v1598
        %v1626 = vmul.f32 %v1582, %v1602
        %v1627 = vmul.f32 %v1583, %v1598
        %v1628 = vmul.f32 %v1584, %v1602
        %v1629 = vmul.f32 %v1585, %v1598
        %v1630 = vmul.f32 %v1586, %v1602
        %v1631 = vmul.f32 %v1587, %v1598
        %v1632 = vmul.f32 %v1588, %v1602
        %v1633 = vmul.f32 %v1589, %v1598
        %v1634 = vmul.f32 %v1590, %v1602
        %v1635 = vmul.f32 %v1591, %v1598
        %v1636 = vmul.f32 %v1592, %v1602
        %v1637 = vadd.f32 %v1605, %v1606
        %1638 = vadd.xlane.f32.xlu0 %v1637
        %v1639 = vpop.xlane.xlu0 %1638
        %v1640 = vadd.f32 %v1607, %v1608
        %1641 = vadd.xlane.f32.xlu0 %v1640
        %v1642 = vpop.xlane.xlu0 %1641
        %v1643 = vadd.f32 %v1609, %v1610
        %1644 = vadd.xlane.f32.xlu0 %v1643
        %v1645 = vpop.xlane.xlu0 %1644
        %v1646 = vadd.f32 %v1611, %v1612
        %1647 = vadd.xlane.f32.xlu0 %v1646
        %v1648 = vpop.xlane.xlu0 %1647
        %v1649 = vadd.f32 %v1613, %v1614
        %1650 = vadd.xlane.f32.xlu0 %v1649
        %v1651 = vpop.xlane.xlu0 %1650
        %v1652 = vadd.f32 %v1615, %v1616
        %1653 = vadd.xlane.f32.xlu0 %v1652
        %v1654 = vpop.xlane.xlu0 %1653
        %v1655 = vadd.f32 %v1617, %v1618
        %1656 = vadd.xlane.f32.xlu0 %v1655
        %v1657 = vpop.xlane.xlu0 %1656
        %v1658 = vadd.f32 %v1619, %v1620
        %1659 = vadd.xlane.f32.xlu0 %v1658
        %v1660 = vpop.xlane.xlu0 %1659
        %v1661 = vadd.f32 %v1621, %v1622
        %1662 = vadd.xlane.f32.xlu0 %v1661
        %v1663 = vpop.xlane.xlu0 %1662
        %v1664 = vadd.f32 %v1623, %v1624
        %1665 = vadd.xlane.f32.xlu0 %v1664
        %v1666 = vpop.xlane.xlu0 %1665
        %v1667 = vadd.f32 %v1625, %v1626
        %1668 = vadd.xlane.f32.xlu0 %v1667
        %v1669 = vpop.xlane.xlu0 %1668
        %v1670 = vadd.f32 %v1627, %v1628
        %1671 = vadd.xlane.f32.xlu0 %v1670
        %v1672 = vpop.xlane.xlu0 %1671
        %v1673 = vadd.f32 %v1629, %v1630
        %1674 = vadd.xlane.f32.xlu0 %v1673
        %v1675 = vpop.xlane.xlu0 %1674
        %v1676 = vadd.f32 %v1631, %v1632
        %1677 = vadd.xlane.f32.xlu0 %v1676
        %v1678 = vpop.xlane.xlu0 %1677
        %v1679 = vadd.f32 %v1633, %v1634
        %1680 = vadd.xlane.f32.xlu0 %v1679
        %v1681 = vpop.xlane.xlu0 %1680
        %v1682 = vadd.f32 %v1635, %v1636
        %1683 = vadd.xlane.f32.xlu0 %v1682
        %v1684 = vpop.xlane.xlu0 %1683
        %s1685 = sld [smem:[#allocation2]]
        %v1686 = vstv %s1685
        %v1687 = vadd.f32 %v1639, %v1686
        %v1688 = vadd.f32 %v1642, %v1686
        %v1689 = vadd.f32 %v1645, %v1686
        %v1690 = vadd.f32 %v1648, %v1686
        %v1691 = vadd.f32 %v1651, %v1686
        %v1692 = vadd.f32 %v1654, %v1686
        %v1693 = vadd.f32 %v1657, %v1686
        %v1694 = vadd.f32 %v1660, %v1686
        %v1695 = vadd.f32 %v1663, %v1686
        %v1696 = vadd.f32 %v1666, %v1686
        %v1697 = vadd.f32 %v1669, %v1686
        %v1698 = vadd.f32 %v1672, %v1686
        %v1699 = vadd.f32 %v1675, %v1686
        %v1700 = vadd.f32 %v1678, %v1686
        %v1701 = vadd.f32 %v1681, %v1686
        %v1702 = vadd.f32 %v1684, %v1686
        %v1719 = vlaneseq
        %v1720 = vand.u32 %v1719, 127
        %v1721 = vlaneseq
        %v1722 = vshrl.u32 %v1721, 7
        %v1723 = vsub.s32 %v1720, %v1722
        %v1724 = vrot.slane %v1687, %v1723
        %v1725 = vadd.s32 %v1720, 4294967288
        %v1726 = vlaneseq
        %v1727 = vshrl.u32 %v1726, 7
        %v1728 = vsub.s32 %v1725, %v1727
        %v1729 = vrot.slane %v1688, %v1728
        %vm1730 = vcmask 130112
        %v1731 = vsel %vm1730, %v1729, %v1724
        %v1732 = vadd.s32 %v1720, 4294967280
        %v1733 = vlaneseq
        %v1734 = vshrl.u32 %v1733, 7
        %v1735 = vsub.s32 %v1732, %v1734
        %v1736 = vrot.slane %v1689, %v1735
        %vm1737 = vcmask 195712
        %v1738 = vsel %vm1737, %v1736, %v1731
        %v1739 = vadd.s32 %v1720, 4294967272
        %v1740 = vlaneseq
        %v1741 = vshrl.u32 %v1740, 7
        %v1742 = vsub.s32 %v1739, %v1741
        %v1743 = vrot.slane %v1690, %v1742
        %vm1744 = vcmask 261312
        %v1745 = vsel %vm1744, %v1743, %v1738
        %v1746 = vadd.s32 %v1720, 4294967264
        %v1747 = vlaneseq
        %v1748 = vshrl.u32 %v1747, 7
        %v1749 = vsub.s32 %v1746, %v1748
        %v1750 = vrot.slane %v1691, %v1749
        %vm1751 = vcmask 326912
        %v1752 = vsel %vm1751, %v1750, %v1745
        %v1753 = vadd.s32 %v1720, 4294967256
        %v1754 = vlaneseq
        %v1755 = vshrl.u32 %v1754, 7
        %v1756 = vsub.s32 %v1753, %v1755
        %v1757 = vrot.slane %v1692, %v1756
        %vm1758 = vcmask 392512
        %v1759 = vsel %vm1758, %v1757, %v1752
        %v1760 = vadd.s32 %v1720, 4294967248
        %v1761 = vlaneseq
        %v1762 = vshrl.u32 %v1761, 7
        %v1763 = vsub.s32 %v1760, %v1762
        %v1764 = vrot.slane %v1693, %v1763
        %vm1765 = vcmask 458112
        %v1766 = vsel %vm1765, %v1764, %v1759
        %v1767 = vadd.s32 %v1720, 4294967240
        %v1768 = vlaneseq
        %v1769 = vshrl.u32 %v1768, 7
        %v1770 = vsub.s32 %v1767, %v1769
        %v1771 = vrot.slane %v1694, %v1770
        %vm1772 = vcmask 523712
        %v1773 = vsel %vm1772, %v1771, %v1766
        %v1774 = vadd.s32 %v1720, 4294967232
        %v1775 = vlaneseq
        %v1776 = vshrl.u32 %v1775, 7
        %v1777 = vsub.s32 %v1774, %v1776
        %v1778 = vrot.slane %v1695, %v1777
        %vm1779 = vcmask 589312
        %v1780 = vsel %vm1779, %v1778, %v1773
        %v1781 = vadd.s32 %v1720, 4294967224
        %v1782 = vlaneseq
        %v1783 = vshrl.u32 %v1782, 7
        %v1784 = vsub.s32 %v1781, %v1783
        %v1785 = vrot.slane %v1696, %v1784
        %vm1786 = vcmask 654912
        %v1787 = vsel %vm1786, %v1785, %v1780
        %v1788 = vadd.s32 %v1720, 4294967216
        %v1789 = vlaneseq
        %v1790 = vshrl.u32 %v1789, 7
        %v1791 = vsub.s32 %v1788, %v1790
        %v1792 = vrot.slane %v1697, %v1791
        %vm1793 = vcmask 720512
        %v1794 = vsel %vm1793, %v1792, %v1787
        %v1795 = vadd.s32 %v1720, 4294967208
        %v1796 = vlaneseq
        %v1797 = vshrl.u32 %v1796, 7
        %v1798 = vsub.s32 %v1795, %v1797
        %v1799 = vrot.slane %v1698, %v1798
        %vm1800 = vcmask 786112
        %v1801 = vsel %vm1800, %v1799, %v1794
        %v1802 = vadd.s32 %v1720, 4294967200
        %v1803 = vlaneseq
        %v1804 = vshrl.u32 %v1803, 7
        %v1805 = vsub.s32 %v1802, %v1804
        %v1806 = vrot.slane %v1699, %v1805
        %vm1807 = vcmask 851712
        %v1808 = vsel %vm1807, %v1806, %v1801
        %v1809 = vadd.s32 %v1720, 4294967192
        %v1810 = vlaneseq
        %v1811 = vshrl.u32 %v1810, 7
        %v1812 = vsub.s32 %v1809, %v1811
        %v1813 = vrot.slane %v1700, %v1812
        %vm1814 = vcmask 917312
        %v1815 = vsel %vm1814, %v1813, %v1808
        %v1816 = vadd.s32 %v1720, 4294967184
        %v1817 = vlaneseq
        %v1818 = vshrl.u32 %v1817, 7
        %v1819 = vsub.s32 %v1816, %v1818
        %v1820 = vrot.slane %v1701, %v1819
        %vm1821 = vcmask 982912
        %v1822 = vsel %vm1821, %v1820, %v1815
        %v1823 = vadd.s32 %v1720, 4294967176
        %v1824 = vlaneseq
        %v1825 = vshrl.u32 %v1824, 7
        %v1826 = vsub.s32 %v1823, %v1825
        %v1827 = vrot.slane %v1702, %v1826
        %vm1828 = vcmask 1048512
        %v1829 = vsel %vm1828, %v1827, %v1822
        %1831 = vst [vmem:[%s415] sm:$0x1] %v1829
        %p1832 = scmp.lt.s32.totalorder %s25, 1
        %s1833 = scalar_select %p1832, %s25, 1
        %s1834 = scalar_lea.vmem %s11, %s1833
        // Predicated region
        $region73: #{mlp_forward.1} parent=63 // pred_check
          %p1835 = pneg %p279
        $region74: #{mlp_forward.1} parent=63 // pred_check_branch
          %1837 = sbr.rel (%p1835) target = $region76
        $region75: #{mlp_forward.1} parent=63 // pred_region
          _
        $region76: #{mlp_forward.1} parent=63 // pred_fallthru
          _
      $region64: #{mlp_forward.1} parent=5 // pred_fallthru
        _
      %p1838 = scmp.le.s32.totalorder 2, %s20
      // Predicated region
      $region77: #{mlp_forward.1} parent=5 // pred_check
        %p1839 = pneg %p1838
      $region78: #{mlp_forward.1} parent=5 // pred_check_branch
        %1841 = sbr.rel (%p1839) target = $region80
      $region79: #{mlp_forward.1} parent=5 // pred_region
        %s1842 = ssub.s32 %s20, 2
        // Predicated region
        $region81: #{mlp_forward.1} parent=79 // pred_check
          %p1843 = pneg %p285
        $region82: #{mlp_forward.1} parent=79 // pred_check_branch
          %1845 = sbr.rel (%p1843) target = $region84
        $region83: #{mlp_forward.1} parent=79 // pred_region
          %p1846 = scmp.lt.s32.totalorder %s26, 1
          %s1847 = scalar_select %p1846, %s26, 1
          %s1848 = scalar_lea.vmem %s11, %s1847
        $region84: #{mlp_forward.1} parent=79 // pred_fallthru
          _
      $region80: #{mlp_forward.1} parent=5 // pred_fallthru
        _
    $region6: #{mlp_forward.1} parent=1 // loop_footer
      %s24 = sadd.s32 1, %s20
    $region7: #{mlp_forward.1} parent=1 // loop_footer_branch
      %19 = sbr.rel target = $region3
    $region8: #{mlp_forward.1} parent=1 // loop_exit
      _
    %1849 = vsyncpa [#allocation4], 1
    %s1850 = scalar_lea.sflag [#allocation4], 1
    %1851 = vsyncpa %s1850, 1
    %1852 = vsyncpa [#allocation6], 1

</llo_original>
